<compile_context>
chip_gen: v6e
topology: v6e:2x2x1
jax: 0.10.0
libtpu: 0.0.40
codegen_flags: <defaults>
</compile_context>

<pallas_src>
import functools

import jax
import jax.numpy as jnp
from jax.experimental import pallas as pl
from jax.experimental.pallas import tpu as pltpu


def _round_up(x, m):
    return (x + m - 1) // m * m


def _pick_channel_tile(C, H, W, itemsize, budget_bytes=1 << 20, max_ct=8):
    """Largest divisor of C (<= max_ct) whose padded VMEM footprint fits budget."""
    plane = _round_up(H, 8) * _round_up(W, 128) * itemsize  # (8,128)-tiled plane
    best = 1
    for ct in range(1, min(C, max_ct) + 1):
        if C % ct == 0 and ct * plane <= budget_bytes:
            best = ct
    return best


def _dw_conv_kernel(x_ref, w_ref, b_ref, o_ref, acc_ref, *,
                    ksize, padding, ct, h, w, h_out, w_out):
    # x_ref:   (Ct, H, W)        input dtype (batch dim squeezed)
    # w_ref:   (C*K*K,)  f32     flattened depthwise weights, SMEM resident
    # b_ref:   (C,)      f32     SMEM resident
    # o_ref:   (Ct, H_out, W_out) output dtype
    # acc_ref: (Ct, H_out, W_out) f32 VMEM scratch
    K = ksize
    p = padding
    ct_idx = pl.program_id(1)

    for c in range(ct):                       # static unroll over the channel tile
        ch = ct_idx * ct + c                  # global channel (traced scalar)
        base = ch * (K * K)

        # Start the accumulator at the per-channel bias (saves a separate add).
        acc_ref[c, :, :] = jnp.full((h_out, w_out), b_ref[ch], dtype=jnp.float32)

        # K*K taps; all offsets are Python ints -> static ref slices (offset
        # vector loads, no relayout).  Out-of-range halo == skipped region.
        for ki in range(K):
            di = ki - p
            oi0 = max(0, -di)
            oi1 = min(h_out, h - di)
            if oi1 <= oi0:
                continue
            for kj in range(K):
                dj = kj - p
                oj0 = max(0, -dj)
                oj1 = min(w_out, w - dj)
                if oj1 <= oj0:
                    continue
                wt = w_ref[base + ki * K + kj]          # scalar from SMEM
                xs = x_ref[c, oi0 + di:oi1 + di,
                           oj0 + dj:oj1 + dj].astype(jnp.float32)
                acc_ref[c, oi0:oi1, oj0:oj1] += xs * wt

    o_ref[...] = acc_ref[...].astype(o_ref.dtype)


def naive_conv_filter(x, weight, bias, *, kernel_size, padding):
    """Pallas implementation of NaiveConvFilter.forward(x).

    x:      (B, C, H, W)
    weight: (C, 1, K, K)   depthwise conv weight (torch layout)
    bias:   (C,)
    """
    B, C, H, W = x.shape
    K = kernel_size
    H_out = H + 2 * padding - K + 1
    W_out = W + 2 * padding - K + 1
    assert H_out > 0 and W_out > 0

    Ct = _pick_channel_tile(C, H, W, jnp.dtype(x.dtype).itemsize)

    # Flatten params to 1-D f32 for compact SMEM residency (scalar reads).
    w_flat = weight.reshape(C * K * K).astype(jnp.float32)
    b_flat = bias.reshape(C).astype(jnp.float32)

    kernel = functools.partial(
        _dw_conv_kernel, ksize=K, padding=padding, ct=Ct,
        h=H, w=W, h_out=H_out, w_out=W_out)

    out = pl.pallas_call(
        kernel,
        out_shape=jax.ShapeDtypeStruct((B, C, H_out, W_out), x.dtype),
        grid_spec=pltpu.PrefetchScalarGridSpec(
            num_scalar_prefetch=0,
            grid=(B, C // Ct),
            in_specs=[
                # Ct unpadded channel-images per grid step (batch squeezed).
                pl.BlockSpec((None, Ct, H, W), lambda b, c: (b, c, 0, 0)),
                # Parameters: whole arrays, resident in SMEM for the full grid.
                pl.BlockSpec(memory_space=pltpu.MemorySpace.SMEM),
                pl.BlockSpec(memory_space=pltpu.MemorySpace.SMEM),
            ],
            out_specs=pl.BlockSpec((None, Ct, H_out, W_out),
                                   lambda b, c: (b, c, 0, 0)),
            scratch_shapes=[pltpu.VMEM((Ct, H_out, W_out), jnp.float32)],
        ),
        compiler_params=pltpu.CompilerParams(
            dimension_semantics=("parallel", "parallel"),
            vmem_limit_bytes=32 * 1024 * 1024),
    )(x, w_flat, b_flat)

    return out


def naive_conv_filter_ref(x, weight, bias, *, padding):
    """Pure-JAX reference (depthwise conv, matches nn.Conv2d groups=C)."""
    out = jax.lax.conv_general_dilated(
        x.astype(jnp.float32), weight.astype(jnp.float32),
        window_strides=(1, 1),
        padding=[(padding, padding), (padding, padding)],
        dimension_numbers=("NCHW", "OIHW", "NCHW"),
        feature_group_count=x.shape[1],
        precision=jax.lax.Precision.HIGHEST)
    return (out + bias[None, :, None, None]).astype(x.dtype)


if __name__ == "__main__":
    # Small deterministic config matching the module: depthwise 3x3, pad 1.
    B, C, K, P, H, W = 2, 4, 3, 1, 16, 16

    key = jax.random.PRNGKey(0)
    kx, kw, kb = jax.random.split(key, 3)

    x = jax.random.normal(kx, (B, C, H, W), dtype=jnp.float32)
    # Deterministic parameter init with the torch shapes (C, 1, K, K) / (C,).
    weight = jax.random.normal(kw, (C, 1, K, K), dtype=jnp.float32) * (1.0 / K)
    bias = jax.random.normal(kb, (C,), dtype=jnp.float32) * 0.1

    y = naive_conv_filter(x, weight, bias, kernel_size=K, padding=P)
    y = jax.block_until_ready(y)

    y_ref = naive_conv_filter_ref(x, weight, bias, padding=P)

    assert y.shape == (B, C, H, W), y.shape
    assert jnp.allclose(y, y_ref, atol=1e-5, rtol=1e-5), "mismatch vs reference"

    print("KERNEL_OK")
</pallas_src>

<mosaic_0001>
module attributes {stable_mosaic.version = 11 : i64} {
  func.func @_dw_conv_kernel(%arg0: i32, %arg1: i32, %arg2: memref<1x4x16x16xf32, #tpu.memory_space<vmem>>, %arg3: memref<36xf32, #tpu.memory_space<smem>>, %arg4: memref<4xf32, #tpu.memory_space<smem>>, %arg5: memref<1x4x16x16xf32, #tpu.memory_space<vmem>>, %arg6: memref<4x16x16xf32, #tpu.memory_space<vmem>>) attributes {dimension_semantics = [#tpu.dimension_semantics<parallel>, #tpu.dimension_semantics<parallel>], iteration_bounds = array<i64: 2, 1>, scalar_prefetch = 0 : i64, scratch_operands = 1 : i64, tpu.core_type = #tpu.core_type<tc>, window_params = [{transform_indices = @transform_0, window_bounds = array<i64: 1, 4, 16, 16>}, {transform_indices = @transform_1, window_bounds = array<i64: 36>}, {transform_indices = @transform_2, window_bounds = array<i64: 4>}, {transform_indices = @transform_3, window_bounds = array<i64: 1, 4, 16, 16>}]} {
    %c4_i32 = arith.constant 4 : i32
    %0 = arith.muli %arg1, %c4_i32 : i32
    %c0_i32 = arith.constant 0 : i32
    %1 = arith.addi %0, %c0_i32 : i32
    %c9_i32 = arith.constant 9 : i32
    %2 = arith.muli %1, %c9_i32 : i32
    %3 = arith.index_cast %1 : i32 to index
    %4 = memref.load %arg4[%3] : memref<4xf32, #tpu.memory_space<smem>>
    %5 = vector.broadcast %4 : f32 to vector<16x16xf32>
    %c0 = arith.constant 0 : index
    %c0_0 = arith.constant 0 : index
    %c0_1 = arith.constant 0 : index
    %6 = vector.load %arg6[%c0, %c0_0, %c0_1] : memref<4x16x16xf32, #tpu.memory_space<vmem>>, vector<1x16x16xf32>
    %7 = vector.shape_cast %6 : vector<1x16x16xf32> to vector<16x16xf32>
    %8 = vector.shape_cast %5 : vector<16x16xf32> to vector<1x16x16xf32>
    tpu.vector_store %arg6[%c0, %c0_0, %c0_1], %8 {strides = array<i32>} : memref<4x16x16xf32, #tpu.memory_space<vmem>>, vector<1x16x16xf32>,
    %c0_i32_2 = arith.constant 0 : i32
    %9 = arith.addi %2, %c0_i32_2 : i32
    %c0_i32_3 = arith.constant 0 : i32
    %10 = arith.addi %9, %c0_i32_3 : i32
    %11 = arith.index_cast %10 : i32 to index
    %12 = memref.load %arg3[%11] : memref<36xf32, #tpu.memory_space<smem>>
    %c0_4 = arith.constant 0 : index
    %c0_5 = arith.constant 0 : index
    %c0_6 = arith.constant 0 : index
    %c0_7 = arith.constant 0 : index
    %13 = vector.load %arg2[%c0_4, %c0_5, %c0_6, %c0_7] : memref<1x4x16x16xf32, #tpu.memory_space<vmem>>, vector<1x1x15x15xf32>
    %14 = vector.shape_cast %13 : vector<1x1x15x15xf32> to vector<15x15xf32>
    %c0_8 = arith.constant 0 : index
    %c1 = arith.constant 1 : index
    %c1_9 = arith.constant 1 : index
    %15 = vector.load %arg6[%c0_8, %c1, %c1_9] : memref<4x16x16xf32, #tpu.memory_space<vmem>>, vector<1x15x15xf32>
    %16 = vector.shape_cast %15 : vector<1x15x15xf32> to vector<15x15xf32>
    %17 = vector.broadcast %12 : f32 to vector<15x15xf32>
    %18 = arith.mulf %14, %17 : vector<15x15xf32>
    %19 = arith.addf %16, %18 : vector<15x15xf32>
    %c0_10 = arith.constant 0 : index
    %c1_11 = arith.constant 1 : index
    %c1_12 = arith.constant 1 : index
    %20 = vector.load %arg6[%c0_10, %c1_11, %c1_12] : memref<4x16x16xf32, #tpu.memory_space<vmem>>, vector<1x15x15xf32>
    %21 = vector.shape_cast %20 : vector<1x15x15xf32> to vector<15x15xf32>
    %22 = vector.shape_cast %19 : vector<15x15xf32> to vector<1x15x15xf32>
    tpu.vector_store %arg6[%c0_10, %c1_11, %c1_12], %22 {strides = array<i32>} : memref<4x16x16xf32, #tpu.memory_space<vmem>>, vector<1x15x15xf32>,
    %c0_i32_13 = arith.constant 0 : i32
    %23 = arith.addi %2, %c0_i32_13 : i32
    %c1_i32 = arith.constant 1 : i32
    %24 = arith.addi %23, %c1_i32 : i32
    %25 = arith.index_cast %24 : i32 to index
    %26 = memref.load %arg3[%25] : memref<36xf32, #tpu.memory_space<smem>>
    %c0_14 = arith.constant 0 : index
    %c0_15 = arith.constant 0 : index
    %c0_16 = arith.constant 0 : index
    %c0_17 = arith.constant 0 : index
    %27 = vector.load %arg2[%c0_14, %c0_15, %c0_16, %c0_17] : memref<1x4x16x16xf32, #tpu.memory_space<vmem>>, vector<1x1x15x16xf32>
    %28 = vector.shape_cast %27 : vector<1x1x15x16xf32> to vector<15x16xf32>
    %c0_18 = arith.constant 0 : index
    %c1_19 = arith.constant 1 : index
    %c0_20 = arith.constant 0 : index
    %29 = vector.load %arg6[%c0_18, %c1_19, %c0_20] : memref<4x16x16xf32, #tpu.memory_space<vmem>>, vector<1x15x16xf32>
    %30 = vector.shape_cast %29 : vector<1x15x16xf32> to vector<15x16xf32>
    %31 = vector.broadcast %26 : f32 to vector<15x16xf32>
    %32 = arith.mulf %28, %31 : vector<15x16xf32>
    %33 = arith.addf %30, %32 : vector<15x16xf32>
    %c0_21 = arith.constant 0 : index
    %c1_22 = arith.constant 1 : index
    %c0_23 = arith.constant 0 : index
    %34 = vector.load %arg6[%c0_21, %c1_22, %c0_23] : memref<4x16x16xf32, #tpu.memory_space<vmem>>, vector<1x15x16xf32>
    %35 = vector.shape_cast %34 : vector<1x15x16xf32> to vector<15x16xf32>
    %36 = vector.shape_cast %33 : vector<15x16xf32> to vector<1x15x16xf32>
    tpu.vector_store %arg6[%c0_21, %c1_22, %c0_23], %36 {strides = array<i32>} : memref<4x16x16xf32, #tpu.memory_space<vmem>>, vector<1x15x16xf32>,
    %c0_i32_24 = arith.constant 0 : i32
    %37 = arith.addi %2, %c0_i32_24 : i32
    %c2_i32 = arith.constant 2 : i32
    %38 = arith.addi %37, %c2_i32 : i32
    %39 = arith.index_cast %38 : i32 to index
    %40 = memref.load %arg3[%39] : memref<36xf32, #tpu.memory_space<smem>>
    %c0_25 = arith.constant 0 : index
    %c0_26 = arith.constant 0 : index
    %c0_27 = arith.constant 0 : index
    %c1_28 = arith.constant 1 : index
    %41 = vector.load %arg2[%c0_25, %c0_26, %c0_27, %c1_28] : memref<1x4x16x16xf32, #tpu.memory_space<vmem>>, vector<1x1x15x15xf32>
    %42 = vector.shape_cast %41 : vector<1x1x15x15xf32> to vector<15x15xf32>
    %c0_29 = arith.constant 0 : index
    %c1_30 = arith.constant 1 : index
    %c0_31 = arith.constant 0 : index
    %43 = vector.load %arg6[%c0_29, %c1_30, %c0_31] : memref<4x16x16xf32, #tpu.memory_space<vmem>>, vector<1x15x15xf32>
    %44 = vector.shape_cast %43 : vector<1x15x15xf32> to vector<15x15xf32>
    %45 = vector.broadcast %40 : f32 to vector<15x15xf32>
    %46 = arith.mulf %42, %45 : vector<15x15xf32>
    %47 = arith.addf %44, %46 : vector<15x15xf32>
    %c0_32 = arith.constant 0 : index
    %c1_33 = arith.constant 1 : index
    %c0_34 = arith.constant 0 : index
    %48 = vector.load %arg6[%c0_32, %c1_33, %c0_34] : memref<4x16x16xf32, #tpu.memory_space<vmem>>, vector<1x15x15xf32>
    %49 = vector.shape_cast %48 : vector<1x15x15xf32> to vector<15x15xf32>
    %50 = vector.shape_cast %47 : vector<15x15xf32> to vector<1x15x15xf32>
    tpu.vector_store %arg6[%c0_32, %c1_33, %c0_34], %50 {strides = array<i32>} : memref<4x16x16xf32, #tpu.memory_space<vmem>>, vector<1x15x15xf32>,
    %c3_i32 = arith.constant 3 : i32
    %51 = arith.addi %2, %c3_i32 : i32
    %c0_i32_35 = arith.constant 0 : i32
    %52 = arith.addi %51, %c0_i32_35 : i32
    %53 = arith.index_cast %52 : i32 to index
    %54 = memref.load %arg3[%53] : memref<36xf32, #tpu.memory_space<smem>>
    %c0_36 = arith.constant 0 : index
    %c0_37 = arith.constant 0 : index
    %c0_38 = arith.constant 0 : index
    %c0_39 = arith.constant 0 : index
    %55 = vector.load %arg2[%c0_36, %c0_37, %c0_38, %c0_39] : memref<1x4x16x16xf32, #tpu.memory_space<vmem>>, vector<1x1x16x15xf32>
    %56 = vector.shape_cast %55 : vector<1x1x16x15xf32> to vector<16x15xf32>
    %c0_40 = arith.constant 0 : index
    %c0_41 = arith.constant 0 : index
    %c1_42 = arith.constant 1 : index
    %57 = vector.load %arg6[%c0_40, %c0_41, %c1_42] : memref<4x16x16xf32, #tpu.memory_space<vmem>>, vector<1x16x15xf32>
    %58 = vector.shape_cast %57 : vector<1x16x15xf32> to vector<16x15xf32>
    %59 = vector.broadcast %54 : f32 to vector<16x15xf32>
    %60 = arith.mulf %56, %59 : vector<16x15xf32>
    %61 = arith.addf %58, %60 : vector<16x15xf32>
    %c0_43 = arith.constant 0 : index
    %c0_44 = arith.constant 0 : index
    %c1_45 = arith.constant 1 : index
    %62 = vector.load %arg6[%c0_43, %c0_44, %c1_45] : memref<4x16x16xf32, #tpu.memory_space<vmem>>, vector<1x16x15xf32>
    %63 = vector.shape_cast %62 : vector<1x16x15xf32> to vector<16x15xf32>
    %64 = vector.shape_cast %61 : vector<16x15xf32> to vector<1x16x15xf32>
    tpu.vector_store %arg6[%c0_43, %c0_44, %c1_45], %64 {strides = array<i32>} : memref<4x16x16xf32, #tpu.memory_space<vmem>>, vector<1x16x15xf32>,
    %c3_i32_46 = arith.constant 3 : i32
    %65 = arith.addi %2, %c3_i32_46 : i32
    %c1_i32_47 = arith.constant 1 : i32
    %66 = arith.addi %65, %c1_i32_47 : i32
    %67 = arith.index_cast %66 : i32 to index
    %68 = memref.load %arg3[%67] : memref<36xf32, #tpu.memory_space<smem>>
    %c0_48 = arith.constant 0 : index
    %c0_49 = arith.constant 0 : index
    %c0_50 = arith.constant 0 : index
    %c0_51 = arith.constant 0 : index
    %69 = vector.load %arg2[%c0_48, %c0_49, %c0_50, %c0_51] : memref<1x4x16x16xf32, #tpu.memory_space<vmem>>, vector<1x1x16x16xf32>
    %70 = vector.shape_cast %69 : vector<1x1x16x16xf32> to vector<16x16xf32>
    %c0_52 = arith.constant 0 : index
    %c0_53 = arith.constant 0 : index
    %c0_54 = arith.constant 0 : index
    %71 = vector.load %arg6[%c0_52, %c0_53, %c0_54] : memref<4x16x16xf32, #tpu.memory_space<vmem>>, vector<1x16x16xf32>
    %72 = vector.shape_cast %71 : vector<1x16x16xf32> to vector<16x16xf32>
    %73 = vector.broadcast %68 : f32 to vector<16x16xf32>
    %74 = arith.mulf %70, %73 : vector<16x16xf32>
    %75 = arith.addf %72, %74 : vector<16x16xf32>
    %c0_55 = arith.constant 0 : index
    %c0_56 = arith.constant 0 : index
    %c0_57 = arith.constant 0 : index
    %76 = vector.load %arg6[%c0_55, %c0_56, %c0_57] : memref<4x16x16xf32, #tpu.memory_space<vmem>>, vector<1x16x16xf32>
    %77 = vector.shape_cast %76 : vector<1x16x16xf32> to vector<16x16xf32>
    %78 = vector.shape_cast %75 : vector<16x16xf32> to vector<1x16x16xf32>
    tpu.vector_store %arg6[%c0_55, %c0_56, %c0_57], %78 {strides = array<i32>} : memref<4x16x16xf32, #tpu.memory_space<vmem>>, vector<1x16x16xf32>,
    %c3_i32_58 = arith.constant 3 : i32
    %79 = arith.addi %2, %c3_i32_58 : i32
    %c2_i32_59 = arith.constant 2 : i32
    %80 = arith.addi %79, %c2_i32_59 : i32
    %81 = arith.index_cast %80 : i32 to index
    %82 = memref.load %arg3[%81] : memref<36xf32, #tpu.memory_space<smem>>
    %c0_60 = arith.constant 0 : index
    %c0_61 = arith.constant 0 : index
    %c0_62 = arith.constant 0 : index
    %c1_63 = arith.constant 1 : index
    %83 = vector.load %arg2[%c0_60, %c0_61, %c0_62, %c1_63] : memref<1x4x16x16xf32, #tpu.memory_space<vmem>>, vector<1x1x16x15xf32>
    %84 = vector.shape_cast %83 : vector<1x1x16x15xf32> to vector<16x15xf32>
    %c0_64 = arith.constant 0 : index
    %c0_65 = arith.constant 0 : index
    %c0_66 = arith.constant 0 : index
    %85 = vector.load %arg6[%c0_64, %c0_65, %c0_66] : memref<4x16x16xf32, #tpu.memory_space<vmem>>, vector<1x16x15xf32>
    %86 = vector.shape_cast %85 : vector<1x16x15xf32> to vector<16x15xf32>
    %87 = vector.broadcast %82 : f32 to vector<16x15xf32>
    %88 = arith.mulf %84, %87 : vector<16x15xf32>
    %89 = arith.addf %86, %88 : vector<16x15xf32>
    %c0_67 = arith.constant 0 : index
    %c0_68 = arith.constant 0 : index
    %c0_69 = arith.constant 0 : index
    %90 = vector.load %arg6[%c0_67, %c0_68, %c0_69] : memref<4x16x16xf32, #tpu.memory_space<vmem>>, vector<1x16x15xf32>
    %91 = vector.shape_cast %90 : vector<1x16x15xf32> to vector<16x15xf32>
    %92 = vector.shape_cast %89 : vector<16x15xf32> to vector<1x16x15xf32>
    tpu.vector_store %arg6[%c0_67, %c0_68, %c0_69], %92 {strides = array<i32>} : memref<4x16x16xf32, #tpu.memory_space<vmem>>, vector<1x16x15xf32>,
    %c6_i32 = arith.constant 6 : i32
    %93 = arith.addi %2, %c6_i32 : i32
    %c0_i32_70 = arith.constant 0 : i32
    %94 = arith.addi %93, %c0_i32_70 : i32
    %95 = arith.index_cast %94 : i32 to index
    %96 = memref.load %arg3[%95] : memref<36xf32, #tpu.memory_space<smem>>
    %c0_71 = arith.constant 0 : index
    %c0_72 = arith.constant 0 : index
    %c1_73 = arith.constant 1 : index
    %c0_74 = arith.constant 0 : index
    %97 = vector.load %arg2[%c0_71, %c0_72, %c1_73, %c0_74] : memref<1x4x16x16xf32, #tpu.memory_space<vmem>>, vector<1x1x15x15xf32>
    %98 = vector.shape_cast %97 : vector<1x1x15x15xf32> to vector<15x15xf32>
    %c0_75 = arith.constant 0 : index
    %c0_76 = arith.constant 0 : index
    %c1_77 = arith.constant 1 : index
    %99 = vector.load %arg6[%c0_75, %c0_76, %c1_77] : memref<4x16x16xf32, #tpu.memory_space<vmem>>, vector<1x15x15xf32>
    %100 = vector.shape_cast %99 : vector<1x15x15xf32> to vector<15x15xf32>
    %101 = vector.broadcast %96 : f32 to vector<15x15xf32>
    %102 = arith.mulf %98, %101 : vector<15x15xf32>
    %103 = arith.addf %100, %102 : vector<15x15xf32>
    %c0_78 = arith.constant 0 : index
    %c0_79 = arith.constant 0 : index
    %c1_80 = arith.constant 1 : index
    %104 = vector.load %arg6[%c0_78, %c0_79, %c1_80] : memref<4x16x16xf32, #tpu.memory_space<vmem>>, vector<1x15x15xf32>
    %105 = vector.shape_cast %104 : vector<1x15x15xf32> to vector<15x15xf32>
    %106 = vector.shape_cast %103 : vector<15x15xf32> to vector<1x15x15xf32>
    tpu.vector_store %arg6[%c0_78, %c0_79, %c1_80], %106 {strides = array<i32>} : memref<4x16x16xf32, #tpu.memory_space<vmem>>, vector<1x15x15xf32>,
    %c6_i32_81 = arith.constant 6 : i32
    %107 = arith.addi %2, %c6_i32_81 : i32
    %c1_i32_82 = arith.constant 1 : i32
    %108 = arith.addi %107, %c1_i32_82 : i32
    %109 = arith.index_cast %108 : i32 to index
    %110 = memref.load %arg3[%109] : memref<36xf32, #tpu.memory_space<smem>>
    %c0_83 = arith.constant 0 : index
    %c0_84 = arith.constant 0 : index
    %c1_85 = arith.constant 1 : index
    %c0_86 = arith.constant 0 : index
    %111 = vector.load %arg2[%c0_83, %c0_84, %c1_85, %c0_86] : memref<1x4x16x16xf32, #tpu.memory_space<vmem>>, vector<1x1x15x16xf32>
    %112 = vector.shape_cast %111 : vector<1x1x15x16xf32> to vector<15x16xf32>
    %c0_87 = arith.constant 0 : index
    %c0_88 = arith.constant 0 : index
    %c0_89 = arith.constant 0 : index
    %113 = vector.load %arg6[%c0_87, %c0_88, %c0_89] : memref<4x16x16xf32, #tpu.memory_space<vmem>>, vector<1x15x16xf32>
    %114 = vector.shape_cast %113 : vector<1x15x16xf32> to vector<15x16xf32>
    %115 = vector.broadcast %110 : f32 to vector<15x16xf32>
    %116 = arith.mulf %112, %115 : vector<15x16xf32>
    %117 = arith.addf %114, %116 : vector<15x16xf32>
    %c0_90 = arith.constant 0 : index
    %c0_91 = arith.constant 0 : index
    %c0_92 = arith.constant 0 : index
    %118 = vector.load %arg6[%c0_90, %c0_91, %c0_92] : memref<4x16x16xf32, #tpu.memory_space<vmem>>, vector<1x15x16xf32>
    %119 = vector.shape_cast %118 : vector<1x15x16xf32> to vector<15x16xf32>
    %120 = vector.shape_cast %117 : vector<15x16xf32> to vector<1x15x16xf32>
    tpu.vector_store %arg6[%c0_90, %c0_91, %c0_92], %120 {strides = array<i32>} : memref<4x16x16xf32, #tpu.memory_space<vmem>>, vector<1x15x16xf32>,
    %c6_i32_93 = arith.constant 6 : i32
    %121 = arith.addi %2, %c6_i32_93 : i32
    %c2_i32_94 = arith.constant 2 : i32
    %122 = arith.addi %121, %c2_i32_94 : i32
    %123 = arith.index_cast %122 : i32 to index
    %124 = memref.load %arg3[%123] : memref<36xf32, #tpu.memory_space<smem>>
    %c0_95 = arith.constant 0 : index
    %c0_96 = arith.constant 0 : index
    %c1_97 = arith.constant 1 : index
    %c1_98 = arith.constant 1 : index
    %125 = vector.load %arg2[%c0_95, %c0_96, %c1_97, %c1_98] : memref<1x4x16x16xf32, #tpu.memory_space<vmem>>, vector<1x1x15x15xf32>
    %126 = vector.shape_cast %125 : vector<1x1x15x15xf32> to vector<15x15xf32>
    %c0_99 = arith.constant 0 : index
    %c0_100 = arith.constant 0 : index
    %c0_101 = arith.constant 0 : index
    %127 = vector.load %arg6[%c0_99, %c0_100, %c0_101] : memref<4x16x16xf32, #tpu.memory_space<vmem>>, vector<1x15x15xf32>
    %128 = vector.shape_cast %127 : vector<1x15x15xf32> to vector<15x15xf32>
    %129 = vector.broadcast %124 : f32 to vector<15x15xf32>
    %130 = arith.mulf %126, %129 : vector<15x15xf32>
    %131 = arith.addf %128, %130 : vector<15x15xf32>
    %c0_102 = arith.constant 0 : index
    %c0_103 = arith.constant 0 : index
    %c0_104 = arith.constant 0 : index
    %132 = vector.load %arg6[%c0_102, %c0_103, %c0_104] : memref<4x16x16xf32, #tpu.memory_space<vmem>>, vector<1x15x15xf32>
    %133 = vector.shape_cast %132 : vector<1x15x15xf32> to vector<15x15xf32>
    %134 = vector.shape_cast %131 : vector<15x15xf32> to vector<1x15x15xf32>
    tpu.vector_store %arg6[%c0_102, %c0_103, %c0_104], %134 {strides = array<i32>} : memref<4x16x16xf32, #tpu.memory_space<vmem>>, vector<1x15x15xf32>,
    %c4_i32_105 = arith.constant 4 : i32
    %135 = arith.muli %arg1, %c4_i32_105 : i32
    %c1_i32_106 = arith.constant 1 : i32
    %136 = arith.addi %135, %c1_i32_106 : i32
    %c9_i32_107 = arith.constant 9 : i32
    %137 = arith.muli %136, %c9_i32_107 : i32
    %138 = arith.index_cast %136 : i32 to index
    %139 = memref.load %arg4[%138] : memref<4xf32, #tpu.memory_space<smem>>
    %140 = vector.broadcast %139 : f32 to vector<16x16xf32>
    %c1_108 = arith.constant 1 : index
    %c0_109 = arith.constant 0 : index
    %c0_110 = arith.constant 0 : index
    %141 = vector.load %arg6[%c1_108, %c0_109, %c0_110] : memref<4x16x16xf32, #tpu.memory_space<vmem>>, vector<1x16x16xf32>
    %142 = vector.shape_cast %141 : vector<1x16x16xf32> to vector<16x16xf32>
    %143 = vector.shape_cast %140 : vector<16x16xf32> to vector<1x16x16xf32>
    tpu.vector_store %arg6[%c1_108, %c0_109, %c0_110], %143 {strides = array<i32>} : memref<4x16x16xf32, #tpu.memory_space<vmem>>, vector<1x16x16xf32>,
    %c0_i32_111 = arith.constant 0 : i32
    %144 = arith.addi %137, %c0_i32_111 : i32
    %c0_i32_112 = arith.constant 0 : i32
    %145 = arith.addi %144, %c0_i32_112 : i32
    %146 = arith.index_cast %145 : i32 to index
    %147 = memref.load %arg3[%146] : memref<36xf32, #tpu.memory_space<smem>>
    %c0_113 = arith.constant 0 : index
    %c1_114 = arith.constant 1 : index
    %c0_115 = arith.constant 0 : index
    %c0_116 = arith.constant 0 : index
    %148 = vector.load %arg2[%c0_113, %c1_114, %c0_115, %c0_116] : memref<1x4x16x16xf32, #tpu.memory_space<vmem>>, vector<1x1x15x15xf32>
    %149 = vector.shape_cast %148 : vector<1x1x15x15xf32> to vector<15x15xf32>
    %c1_117 = arith.constant 1 : index
    %c1_118 = arith.constant 1 : index
    %c1_119 = arith.constant 1 : index
    %150 = vector.load %arg6[%c1_117, %c1_118, %c1_119] : memref<4x16x16xf32, #tpu.memory_space<vmem>>, vector<1x15x15xf32>
    %151 = vector.shape_cast %150 : vector<1x15x15xf32> to vector<15x15xf32>
    %152 = vector.broadcast %147 : f32 to vector<15x15xf32>
    %153 = arith.mulf %149, %152 : vector<15x15xf32>
    %154 = arith.addf %151, %153 : vector<15x15xf32>
    %c1_120 = arith.constant 1 : index
    %c1_121 = arith.constant 1 : index
    %c1_122 = arith.constant 1 : index
    %155 = vector.load %arg6[%c1_120, %c1_121, %c1_122] : memref<4x16x16xf32, #tpu.memory_space<vmem>>, vector<1x15x15xf32>
    %156 = vector.shape_cast %155 : vector<1x15x15xf32> to vector<15x15xf32>
    %157 = vector.shape_cast %154 : vector<15x15xf32> to vector<1x15x15xf32>
    tpu.vector_store %arg6[%c1_120, %c1_121, %c1_122], %157 {strides = array<i32>} : memref<4x16x16xf32, #tpu.memory_space<vmem>>, vector<1x15x15xf32>,
    %c0_i32_123 = arith.constant 0 : i32
    %158 = arith.addi %137, %c0_i32_123 : i32
    %c1_i32_124 = arith.constant 1 : i32
    %159 = arith.addi %158, %c1_i32_124 : i32
    %160 = arith.index_cast %159 : i32 to index
    %161 = memref.load %arg3[%160] : memref<36xf32, #tpu.memory_space<smem>>
    %c0_125 = arith.constant 0 : index
    %c1_126 = arith.constant 1 : index
    %c0_127 = arith.constant 0 : index
    %c0_128 = arith.constant 0 : index
    %162 = vector.load %arg2[%c0_125, %c1_126, %c0_127, %c0_128] : memref<1x4x16x16xf32, #tpu.memory_space<vmem>>, vector<1x1x15x16xf32>
    %163 = vector.shape_cast %162 : vector<1x1x15x16xf32> to vector<15x16xf32>
    %c1_129 = arith.constant 1 : index
    %c1_130 = arith.constant 1 : index
    %c0_131 = arith.constant 0 : index
    %164 = vector.load %arg6[%c1_129, %c1_130, %c0_131] : memref<4x16x16xf32, #tpu.memory_space<vmem>>, vector<1x15x16xf32>
    %165 = vector.shape_cast %164 : vector<1x15x16xf32> to vector<15x16xf32>
    %166 = vector.broadcast %161 : f32 to vector<15x16xf32>
    %167 = arith.mulf %163, %166 : vector<15x16xf32>
    %168 = arith.addf %165, %167 : vector<15x16xf32>
    %c1_132 = arith.constant 1 : index
    %c1_133 = arith.constant 1 : index
    %c0_134 = arith.constant 0 : index
    %169 = vector.load %arg6[%c1_132, %c1_133, %c0_134] : memref<4x16x16xf32, #tpu.memory_space<vmem>>, vector<1x15x16xf32>
    %170 = vector.shape_cast %169 : vector<1x15x16xf32> to vector<15x16xf32>
    %171 = vector.shape_cast %168 : vector<15x16xf32> to vector<1x15x16xf32>
    tpu.vector_store %arg6[%c1_132, %c1_133, %c0_134], %171 {strides = array<i32>} : memref<4x16x16xf32, #tpu.memory_space<vmem>>, vector<1x15x16xf32>,
    %c0_i32_135 = arith.constant 0 : i32
    %172 = arith.addi %137, %c0_i32_135 : i32
    %c2_i32_136 = arith.constant 2 : i32
    %173 = arith.addi %172, %c2_i32_136 : i32
    %174 = arith.index_cast %173 : i32 to index
    %175 = memref.load %arg3[%174] : memref<36xf32, #tpu.memory_space<smem>>
    %c0_137 = arith.constant 0 : index
    %c1_138 = arith.constant 1 : index
    %c0_139 = arith.constant 0 : index
    %c1_140 = arith.constant 1 : index
    %176 = vector.load %arg2[%c0_137, %c1_138, %c0_139, %c1_140] : memref<1x4x16x16xf32, #tpu.memory_space<vmem>>, vector<1x1x15x15xf32>
    %177 = vector.shape_cast %176 : vector<1x1x15x15xf32> to vector<15x15xf32>
    %c1_141 = arith.constant 1 : index
    %c1_142 = arith.constant 1 : index
    %c0_143 = arith.constant 0 : index
    %178 = vector.load %arg6[%c1_141, %c1_142, %c0_143] : memref<4x16x16xf32, #tpu.memory_space<vmem>>, vector<1x15x15xf32>
    %179 = vector.shape_cast %178 : vector<1x15x15xf32> to vector<15x15xf32>
    %180 = vector.broadcast %175 : f32 to vector<15x15xf32>
    %181 = arith.mulf %177, %180 : vector<15x15xf32>
    %182 = arith.addf %179, %181 : vector<15x15xf32>
    %c1_144 = arith.constant 1 : index
    %c1_145 = arith.constant 1 : index
    %c0_146 = arith.constant 0 : index
    %183 = vector.load %arg6[%c1_144, %c1_145, %c0_146] : memref<4x16x16xf32, #tpu.memory_space<vmem>>, vector<1x15x15xf32>
    %184 = vector.shape_cast %183 : vector<1x15x15xf32> to vector<15x15xf32>
    %185 = vector.shape_cast %182 : vector<15x15xf32> to vector<1x15x15xf32>
    tpu.vector_store %arg6[%c1_144, %c1_145, %c0_146], %185 {strides = array<i32>} : memref<4x16x16xf32, #tpu.memory_space<vmem>>, vector<1x15x15xf32>,
    %c3_i32_147 = arith.constant 3 : i32
    %186 = arith.addi %137, %c3_i32_147 : i32
    %c0_i32_148 = arith.constant 0 : i32
    %187 = arith.addi %186, %c0_i32_148 : i32
    %188 = arith.index_cast %187 : i32 to index
    %189 = memref.load %arg3[%188] : memref<36xf32, #tpu.memory_space<smem>>
    %c0_149 = arith.constant 0 : index
    %c1_150 = arith.constant 1 : index
    %c0_151 = arith.constant 0 : index
    %c0_152 = arith.constant 0 : index
    %190 = vector.load %arg2[%c0_149, %c1_150, %c0_151, %c0_152] : memref<1x4x16x16xf32, #tpu.memory_space<vmem>>, vector<1x1x16x15xf32>
    %191 = vector.shape_cast %190 : vector<1x1x16x15xf32> to vector<16x15xf32>
    %c1_153 = arith.constant 1 : index
    %c0_154 = arith.constant 0 : index
    %c1_155 = arith.constant 1 : index
    %192 = vector.load %arg6[%c1_153, %c0_154, %c1_155] : memref<4x16x16xf32, #tpu.memory_space<vmem>>, vector<1x16x15xf32>
    %193 = vector.shape_cast %192 : vector<1x16x15xf32> to vector<16x15xf32>
    %194 = vector.broadcast %189 : f32 to vector<16x15xf32>
    %195 = arith.mulf %191, %194 : vector<16x15xf32>
    %196 = arith.addf %193, %195 : vector<16x15xf32>
    %c1_156 = arith.constant 1 : index
    %c0_157 = arith.constant 0 : index
    %c1_158 = arith.constant 1 : index
    %197 = vector.load %arg6[%c1_156, %c0_157, %c1_158] : memref<4x16x16xf32, #tpu.memory_space<vmem>>, vector<1x16x15xf32>
    %198 = vector.shape_cast %197 : vector<1x16x15xf32> to vector<16x15xf32>
    %199 = vector.shape_cast %196 : vector<16x15xf32> to vector<1x16x15xf32>
    tpu.vector_store %arg6[%c1_156, %c0_157, %c1_158], %199 {strides = array<i32>} : memref<4x16x16xf32, #tpu.memory_space<vmem>>, vector<1x16x15xf32>,
    %c3_i32_159 = arith.constant 3 : i32
    %200 = arith.addi %137, %c3_i32_159 : i32
    %c1_i32_160 = arith.constant 1 : i32
    %201 = arith.addi %200, %c1_i32_160 : i32
    %202 = arith.index_cast %201 : i32 to index
    %203 = memref.load %arg3[%202] : memref<36xf32, #tpu.memory_space<smem>>
    %c0_161 = arith.constant 0 : index
    %c1_162 = arith.constant 1 : index
    %c0_163 = arith.constant 0 : index
    %c0_164 = arith.constant 0 : index
    %204 = vector.load %arg2[%c0_161, %c1_162, %c0_163, %c0_164] : memref<1x4x16x16xf32, #tpu.memory_space<vmem>>, vector<1x1x16x16xf32>
    %205 = vector.shape_cast %204 : vector<1x1x16x16xf32> to vector<16x16xf32>
    %c1_165 = arith.constant 1 : index
    %c0_166 = arith.constant 0 : index
    %c0_167 = arith.constant 0 : index
    %206 = vector.load %arg6[%c1_165, %c0_166, %c0_167] : memref<4x16x16xf32, #tpu.memory_space<vmem>>, vector<1x16x16xf32>
    %207 = vector.shape_cast %206 : vector<1x16x16xf32> to vector<16x16xf32>
    %208 = vector.broadcast %203 : f32 to vector<16x16xf32>
    %209 = arith.mulf %205, %208 : vector<16x16xf32>
    %210 = arith.addf %207, %209 : vector<16x16xf32>
    %c1_168 = arith.constant 1 : index
    %c0_169 = arith.constant 0 : index
    %c0_170 = arith.constant 0 : index
    %211 = vector.load %arg6[%c1_168, %c0_169, %c0_170] : memref<4x16x16xf32, #tpu.memory_space<vmem>>, vector<1x16x16xf32>
    %212 = vector.shape_cast %211 : vector<1x16x16xf32> to vector<16x16xf32>
    %213 = vector.shape_cast %210 : vector<16x16xf32> to vector<1x16x16xf32>
    tpu.vector_store %arg6[%c1_168, %c0_169, %c0_170], %213 {strides = array<i32>} : memref<4x16x16xf32, #tpu.memory_space<vmem>>, vector<1x16x16xf32>,
    %c3_i32_171 = arith.constant 3 : i32
    %214 = arith.addi %137, %c3_i32_171 : i32
    %c2_i32_172 = arith.constant 2 : i32
    %215 = arith.addi %214, %c2_i32_172 : i32
    %216 = arith.index_cast %215 : i32 to index
    %217 = memref.load %arg3[%216] : memref<36xf32, #tpu.memory_space<smem>>
    %c0_173 = arith.constant 0 : index
    %c1_174 = arith.constant 1 : index
    %c0_175 = arith.constant 0 : index
    %c1_176 = arith.constant 1 : index
    %218 = vector.load %arg2[%c0_173, %c1_174, %c0_175, %c1_176] : memref<1x4x16x16xf32, #tpu.memory_space<vmem>>, vector<1x1x16x15xf32>
    %219 = vector.shape_cast %218 : vector<1x1x16x15xf32> to vector<16x15xf32>
    %c1_177 = arith.constant 1 : index
    %c0_178 = arith.constant 0 : index
    %c0_179 = arith.constant 0 : index
    %220 = vector.load %arg6[%c1_177, %c0_178, %c0_179] : memref<4x16x16xf32, #tpu.memory_space<vmem>>, vector<1x16x15xf32>
    %221 = vector.shape_cast %220 : vector<1x16x15xf32> to vector<16x15xf32>
    %222 = vector.broadcast %217 : f32 to vector<16x15xf32>
    %223 = arith.mulf %219, %222 : vector<16x15xf32>
    %224 = arith.addf %221, %223 : vector<16x15xf32>
    %c1_180 = arith.constant 1 : index
    %c0_181 = arith.constant 0 : index
    %c0_182 = arith.constant 0 : index
    %225 = vector.load %arg6[%c1_180, %c0_181, %c0_182] : memref<4x16x16xf32, #tpu.memory_space<vmem>>, vector<1x16x15xf32>
    %226 = vector.shape_cast %225 : vector<1x16x15xf32> to vector<16x15xf32>
    %227 = vector.shape_cast %224 : vector<16x15xf32> to vector<1x16x15xf32>
    tpu.vector_store %arg6[%c1_180, %c0_181, %c0_182], %227 {strides = array<i32>} : memref<4x16x16xf32, #tpu.memory_space<vmem>>, vector<1x16x15xf32>,
    %c6_i32_183 = arith.constant 6 : i32
    %228 = arith.addi %137, %c6_i32_183 : i32
    %c0_i32_184 = arith.constant 0 : i32
    %229 = arith.addi %228, %c0_i32_184 : i32
    %230 = arith.index_cast %229 : i32 to index
    %231 = memref.load %arg3[%230] : memref<36xf32, #tpu.memory_space<smem>>
    %c0_185 = arith.constant 0 : index
    %c1_186 = arith.constant 1 : index
    %c1_187 = arith.constant 1 : index
    %c0_188 = arith.constant 0 : index
    %232 = vector.load %arg2[%c0_185, %c1_186, %c1_187, %c0_188] : memref<1x4x16x16xf32, #tpu.memory_space<vmem>>, vector<1x1x15x15xf32>
    %233 = vector.shape_cast %232 : vector<1x1x15x15xf32> to vector<15x15xf32>
    %c1_189 = arith.constant 1 : index
    %c0_190 = arith.constant 0 : index
    %c1_191 = arith.constant 1 : index
    %234 = vector.load %arg6[%c1_189, %c0_190, %c1_191] : memref<4x16x16xf32, #tpu.memory_space<vmem>>, vector<1x15x15xf32>
    %235 = vector.shape_cast %234 : vector<1x15x15xf32> to vector<15x15xf32>
    %236 = vector.broadcast %231 : f32 to vector<15x15xf32>
    %237 = arith.mulf %233, %236 : vector<15x15xf32>
    %238 = arith.addf %235, %237 : vector<15x15xf32>
    %c1_192 = arith.constant 1 : index
    %c0_193 = arith.constant 0 : index
    %c1_194 = arith.constant 1 : index
    %239 = vector.load %arg6[%c1_192, %c0_193, %c1_194] : memref<4x16x16xf32, #tpu.memory_space<vmem>>, vector<1x15x15xf32>
    %240 = vector.shape_cast %239 : vector<1x15x15xf32> to vector<15x15xf32>
    %241 = vector.shape_cast %238 : vector<15x15xf32> to vector<1x15x15xf32>
    tpu.vector_store %arg6[%c1_192, %c0_193, %c1_194], %241 {strides = array<i32>} : memref<4x16x16xf32, #tpu.memory_space<vmem>>, vector<1x15x15xf32>,
    %c6_i32_195 = arith.constant 6 : i32
    %242 = arith.addi %137, %c6_i32_195 : i32
    %c1_i32_196 = arith.constant 1 : i32
    %243 = arith.addi %242, %c1_i32_196 : i32
    %244 = arith.index_cast %243 : i32 to index
    %245 = memref.load %arg3[%244] : memref<36xf32, #tpu.memory_space<smem>>
    %c0_197 = arith.constant 0 : index
    %c1_198 = arith.constant 1 : index
    %c1_199 = arith.constant 1 : index
    %c0_200 = arith.constant 0 : index
    %246 = vector.load %arg2[%c0_197, %c1_198, %c1_199, %c0_200] : memref<1x4x16x16xf32, #tpu.memory_space<vmem>>, vector<1x1x15x16xf32>
    %247 = vector.shape_cast %246 : vector<1x1x15x16xf32> to vector<15x16xf32>
    %c1_201 = arith.constant 1 : index
    %c0_202 = arith.constant 0 : index
    %c0_203 = arith.constant 0 : index
    %248 = vector.load %arg6[%c1_201, %c0_202, %c0_203] : memref<4x16x16xf32, #tpu.memory_space<vmem>>, vector<1x15x16xf32>
    %249 = vector.shape_cast %248 : vector<1x15x16xf32> to vector<15x16xf32>
    %250 = vector.broadcast %245 : f32 to vector<15x16xf32>
    %251 = arith.mulf %247, %250 : vector<15x16xf32>
    %252 = arith.addf %249, %251 : vector<15x16xf32>
    %c1_204 = arith.constant 1 : index
    %c0_205 = arith.constant 0 : index
    %c0_206 = arith.constant 0 : index
    %253 = vector.load %arg6[%c1_204, %c0_205, %c0_206] : memref<4x16x16xf32, #tpu.memory_space<vmem>>, vector<1x15x16xf32>
    %254 = vector.shape_cast %253 : vector<1x15x16xf32> to vector<15x16xf32>
    %255 = vector.shape_cast %252 : vector<15x16xf32> to vector<1x15x16xf32>
    tpu.vector_store %arg6[%c1_204, %c0_205, %c0_206], %255 {strides = array<i32>} : memref<4x16x16xf32, #tpu.memory_space<vmem>>, vector<1x15x16xf32>,
    %c6_i32_207 = arith.constant 6 : i32
    %256 = arith.addi %137, %c6_i32_207 : i32
    %c2_i32_208 = arith.constant 2 : i32
    %257 = arith.addi %256, %c2_i32_208 : i32
    %258 = arith.index_cast %257 : i32 to index
    %259 = memref.load %arg3[%258] : memref<36xf32, #tpu.memory_space<smem>>
    %c0_209 = arith.constant 0 : index
    %c1_210 = arith.constant 1 : index
    %c1_211 = arith.constant 1 : index
    %c1_212 = arith.constant 1 : index
    %260 = vector.load %arg2[%c0_209, %c1_210, %c1_211, %c1_212] : memref<1x4x16x16xf32, #tpu.memory_space<vmem>>, vector<1x1x15x15xf32>
    %261 = vector.shape_cast %260 : vector<1x1x15x15xf32> to vector<15x15xf32>
    %c1_213 = arith.constant 1 : index
    %c0_214 = arith.constant 0 : index
    %c0_215 = arith.constant 0 : index
    %262 = vector.load %arg6[%c1_213, %c0_214, %c0_215] : memref<4x16x16xf32, #tpu.memory_space<vmem>>, vector<1x15x15xf32>
    %263 = vector.shape_cast %262 : vector<1x15x15xf32> to vector<15x15xf32>
    %264 = vector.broadcast %259 : f32 to vector<15x15xf32>
    %265 = arith.mulf %261, %264 : vector<15x15xf32>
    %266 = arith.addf %263, %265 : vector<15x15xf32>
    %c1_216 = arith.constant 1 : index
    %c0_217 = arith.constant 0 : index
    %c0_218 = arith.constant 0 : index
    %267 = vector.load %arg6[%c1_216, %c0_217, %c0_218] : memref<4x16x16xf32, #tpu.memory_space<vmem>>, vector<1x15x15xf32>
    %268 = vector.shape_cast %267 : vector<1x15x15xf32> to vector<15x15xf32>
    %269 = vector.shape_cast %266 : vector<15x15xf32> to vector<1x15x15xf32>
    tpu.vector_store %arg6[%c1_216, %c0_217, %c0_218], %269 {strides = array<i32>} : memref<4x16x16xf32, #tpu.memory_space<vmem>>, vector<1x15x15xf32>,
    %c4_i32_219 = arith.constant 4 : i32
    %270 = arith.muli %arg1, %c4_i32_219 : i32
    %c2_i32_220 = arith.constant 2 : i32
    %271 = arith.addi %270, %c2_i32_220 : i32
    %c9_i32_221 = arith.constant 9 : i32
    %272 = arith.muli %271, %c9_i32_221 : i32
    %273 = arith.index_cast %271 : i32 to index
    %274 = memref.load %arg4[%273] : memref<4xf32, #tpu.memory_space<smem>>
    %275 = vector.broadcast %274 : f32 to vector<16x16xf32>
    %c2 = arith.constant 2 : index
    %c0_222 = arith.constant 0 : index
    %c0_223 = arith.constant 0 : index
    %276 = vector.load %arg6[%c2, %c0_222, %c0_223] : memref<4x16x16xf32, #tpu.memory_space<vmem>>, vector<1x16x16xf32>
    %277 = vector.shape_cast %276 : vector<1x16x16xf32> to vector<16x16xf32>
    %278 = vector.shape_cast %275 : vector<16x16xf32> to vector<1x16x16xf32>
    tpu.vector_store %arg6[%c2, %c0_222, %c0_223], %278 {strides = array<i32>} : memref<4x16x16xf32, #tpu.memory_space<vmem>>, vector<1x16x16xf32>,
    %c0_i32_224 = arith.constant 0 : i32
    %279 = arith.addi %272, %c0_i32_224 : i32
    %c0_i32_225 = arith.constant 0 : i32
    %280 = arith.addi %279, %c0_i32_225 : i32
    %281 = arith.index_cast %280 : i32 to index
    %282 = memref.load %arg3[%281] : memref<36xf32, #tpu.memory_space<smem>>
    %c0_226 = arith.constant 0 : index
    %c2_227 = arith.constant 2 : index
    %c0_228 = arith.constant 0 : index
    %c0_229 = arith.constant 0 : index
    %283 = vector.load %arg2[%c0_226, %c2_227, %c0_228, %c0_229] : memref<1x4x16x16xf32, #tpu.memory_space<vmem>>, vector<1x1x15x15xf32>
    %284 = vector.shape_cast %283 : vector<1x1x15x15xf32> to vector<15x15xf32>
    %c2_230 = arith.constant 2 : index
    %c1_231 = arith.constant 1 : index
    %c1_232 = arith.constant 1 : index
    %285 = vector.load %arg6[%c2_230, %c1_231, %c1_232] : memref<4x16x16xf32, #tpu.memory_space<vmem>>, vector<1x15x15xf32>
    %286 = vector.shape_cast %285 : vector<1x15x15xf32> to vector<15x15xf32>
    %287 = vector.broadcast %282 : f32 to vector<15x15xf32>
    %288 = arith.mulf %284, %287 : vector<15x15xf32>
    %289 = arith.addf %286, %288 : vector<15x15xf32>
    %c2_233 = arith.constant 2 : index
    %c1_234 = arith.constant 1 : index
    %c1_235 = arith.constant 1 : index
    %290 = vector.load %arg6[%c2_233, %c1_234, %c1_235] : memref<4x16x16xf32, #tpu.memory_space<vmem>>, vector<1x15x15xf32>
    %291 = vector.shape_cast %290 : vector<1x15x15xf32> to vector<15x15xf32>
    %292 = vector.shape_cast %289 : vector<15x15xf32> to vector<1x15x15xf32>
    tpu.vector_store %arg6[%c2_233, %c1_234, %c1_235], %292 {strides = array<i32>} : memref<4x16x16xf32, #tpu.memory_space<vmem>>, vector<1x15x15xf32>,
    %c0_i32_236 = arith.constant 0 : i32
    %293 = arith.addi %272, %c0_i32_236 : i32
    %c1_i32_237 = arith.constant 1 : i32
    %294 = arith.addi %293, %c1_i32_237 : i32
    %295 = arith.index_cast %294 : i32 to index
    %296 = memref.load %arg3[%295] : memref<36xf32, #tpu.memory_space<smem>>
    %c0_238 = arith.constant 0 : index
    %c2_239 = arith.constant 2 : index
    %c0_240 = arith.constant 0 : index
    %c0_241 = arith.constant 0 : index
    %297 = vector.load %arg2[%c0_238, %c2_239, %c0_240, %c0_241] : memref<1x4x16x16xf32, #tpu.memory_space<vmem>>, vector<1x1x15x16xf32>
    %298 = vector.shape_cast %297 : vector<1x1x15x16xf32> to vector<15x16xf32>
    %c2_242 = arith.constant 2 : index
    %c1_243 = arith.constant 1 : index
    %c0_244 = arith.constant 0 : index
    %299 = vector.load %arg6[%c2_242, %c1_243, %c0_244] : memref<4x16x16xf32, #tpu.memory_space<vmem>>, vector<1x15x16xf32>
    %300 = vector.shape_cast %299 : vector<1x15x16xf32> to vector<15x16xf32>
    %301 = vector.broadcast %296 : f32 to vector<15x16xf32>
    %302 = arith.mulf %298, %301 : vector<15x16xf32>
    %303 = arith.addf %300, %302 : vector<15x16xf32>
    %c2_245 = arith.constant 2 : index
    %c1_246 = arith.constant 1 : index
    %c0_247 = arith.constant 0 : index
    %304 = vector.load %arg6[%c2_245, %c1_246, %c0_247] : memref<4x16x16xf32, #tpu.memory_space<vmem>>, vector<1x15x16xf32>
    %305 = vector.shape_cast %304 : vector<1x15x16xf32> to vector<15x16xf32>
    %306 = vector.shape_cast %303 : vector<15x16xf32> to vector<1x15x16xf32>
    tpu.vector_store %arg6[%c2_245, %c1_246, %c0_247], %306 {strides = array<i32>} : memref<4x16x16xf32, #tpu.memory_space<vmem>>, vector<1x15x16xf32>,
    %c0_i32_248 = arith.constant 0 : i32
    %307 = arith.addi %272, %c0_i32_248 : i32
    %c2_i32_249 = arith.constant 2 : i32
    %308 = arith.addi %307, %c2_i32_249 : i32
    %309 = arith.index_cast %308 : i32 to index
    %310 = memref.load %arg3[%309] : memref<36xf32, #tpu.memory_space<smem>>
    %c0_250 = arith.constant 0 : index
    %c2_251 = arith.constant 2 : index
    %c0_252 = arith.constant 0 : index
    %c1_253 = arith.constant 1 : index
    %311 = vector.load %arg2[%c0_250, %c2_251, %c0_252, %c1_253] : memref<1x4x16x16xf32, #tpu.memory_space<vmem>>, vector<1x1x15x15xf32>
    %312 = vector.shape_cast %311 : vector<1x1x15x15xf32> to vector<15x15xf32>
    %c2_254 = arith.constant 2 : index
    %c1_255 = arith.constant 1 : index
    %c0_256 = arith.constant 0 : index
    %313 = vector.load %arg6[%c2_254, %c1_255, %c0_256] : memref<4x16x16xf32, #tpu.memory_space<vmem>>, vector<1x15x15xf32>
    %314 = vector.shape_cast %313 : vector<1x15x15xf32> to vector<15x15xf32>
    %315 = vector.broadcast %310 : f32 to vector<15x15xf32>
    %316 = arith.mulf %312, %315 : vector<15x15xf32>
    %317 = arith.addf %314, %316 : vector<15x15xf32>
    %c2_257 = arith.constant 2 : index
    %c1_258 = arith.constant 1 : index
    %c0_259 = arith.constant 0 : index
    %318 = vector.load %arg6[%c2_257, %c1_258, %c0_259] : memref<4x16x16xf32, #tpu.memory_space<vmem>>, vector<1x15x15xf32>
    %319 = vector.shape_cast %318 : vector<1x15x15xf32> to vector<15x15xf32>
    %320 = vector.shape_cast %317 : vector<15x15xf32> to vector<1x15x15xf32>
    tpu.vector_store %arg6[%c2_257, %c1_258, %c0_259], %320 {strides = array<i32>} : memref<4x16x16xf32, #tpu.memory_space<vmem>>, vector<1x15x15xf32>,
    %c3_i32_260 = arith.constant 3 : i32
    %321 = arith.addi %272, %c3_i32_260 : i32
    %c0_i32_261 = arith.constant 0 : i32
    %322 = arith.addi %321, %c0_i32_261 : i32
    %323 = arith.index_cast %322 : i32 to index
    %324 = memref.load %arg3[%323] : memref<36xf32, #tpu.memory_space<smem>>
    %c0_262 = arith.constant 0 : index
    %c2_263 = arith.constant 2 : index
    %c0_264 = arith.constant 0 : index
    %c0_265 = arith.constant 0 : index
    %325 = vector.load %arg2[%c0_262, %c2_263, %c0_264, %c0_265] : memref<1x4x16x16xf32, #tpu.memory_space<vmem>>, vector<1x1x16x15xf32>
    %326 = vector.shape_cast %325 : vector<1x1x16x15xf32> to vector<16x15xf32>
    %c2_266 = arith.constant 2 : index
    %c0_267 = arith.constant 0 : index
    %c1_268 = arith.constant 1 : index
    %327 = vector.load %arg6[%c2_266, %c0_267, %c1_268] : memref<4x16x16xf32, #tpu.memory_space<vmem>>, vector<1x16x15xf32>
    %328 = vector.shape_cast %327 : vector<1x16x15xf32> to vector<16x15xf32>
    %329 = vector.broadcast %324 : f32 to vector<16x15xf32>
    %330 = arith.mulf %326, %329 : vector<16x15xf32>
    %331 = arith.addf %328, %330 : vector<16x15xf32>
    %c2_269 = arith.constant 2 : index
    %c0_270 = arith.constant 0 : index
    %c1_271 = arith.constant 1 : index
    %332 = vector.load %arg6[%c2_269, %c0_270, %c1_271] : memref<4x16x16xf32, #tpu.memory_space<vmem>>, vector<1x16x15xf32>
    %333 = vector.shape_cast %332 : vector<1x16x15xf32> to vector<16x15xf32>
    %334 = vector.shape_cast %331 : vector<16x15xf32> to vector<1x16x15xf32>
    tpu.vector_store %arg6[%c2_269, %c0_270, %c1_271], %334 {strides = array<i32>} : memref<4x16x16xf32, #tpu.memory_space<vmem>>, vector<1x16x15xf32>,
    %c3_i32_272 = arith.constant 3 : i32
    %335 = arith.addi %272, %c3_i32_272 : i32
    %c1_i32_273 = arith.constant 1 : i32
    %336 = arith.addi %335, %c1_i32_273 : i32
    %337 = arith.index_cast %336 : i32 to index
    %338 = memref.load %arg3[%337] : memref<36xf32, #tpu.memory_space<smem>>
    %c0_274 = arith.constant 0 : index
    %c2_275 = arith.constant 2 : index
    %c0_276 = arith.constant 0 : index
    %c0_277 = arith.constant 0 : index
    %339 = vector.load %arg2[%c0_274, %c2_275, %c0_276, %c0_277] : memref<1x4x16x16xf32, #tpu.memory_space<vmem>>, vector<1x1x16x16xf32>
    %340 = vector.shape_cast %339 : vector<1x1x16x16xf32> to vector<16x16xf32>
    %c2_278 = arith.constant 2 : index
    %c0_279 = arith.constant 0 : index
    %c0_280 = arith.constant 0 : index
    %341 = vector.load %arg6[%c2_278, %c0_279, %c0_280] : memref<4x16x16xf32, #tpu.memory_space<vmem>>, vector<1x16x16xf32>
    %342 = vector.shape_cast %341 : vector<1x16x16xf32> to vector<16x16xf32>
    %343 = vector.broadcast %338 : f32 to vector<16x16xf32>
    %344 = arith.mulf %340, %343 : vector<16x16xf32>
    %345 = arith.addf %342, %344 : vector<16x16xf32>
    %c2_281 = arith.constant 2 : index
    %c0_282 = arith.constant 0 : index
    %c0_283 = arith.constant 0 : index
    %346 = vector.load %arg6[%c2_281, %c0_282, %c0_283] : memref<4x16x16xf32, #tpu.memory_space<vmem>>, vector<1x16x16xf32>
    %347 = vector.shape_cast %346 : vector<1x16x16xf32> to vector<16x16xf32>
    %348 = vector.shape_cast %345 : vector<16x16xf32> to vector<1x16x16xf32>
    tpu.vector_store %arg6[%c2_281, %c0_282, %c0_283], %348 {strides = array<i32>} : memref<4x16x16xf32, #tpu.memory_space<vmem>>, vector<1x16x16xf32>,
    %c3_i32_284 = arith.constant 3 : i32
    %349 = arith.addi %272, %c3_i32_284 : i32
    %c2_i32_285 = arith.constant 2 : i32
    %350 = arith.addi %349, %c2_i32_285 : i32
    %351 = arith.index_cast %350 : i32 to index
    %352 = memref.load %arg3[%351] : memref<36xf32, #tpu.memory_space<smem>>
    %c0_286 = arith.constant 0 : index
    %c2_287 = arith.constant 2 : index
    %c0_288 = arith.constant 0 : index
    %c1_289 = arith.constant 1 : index
    %353 = vector.load %arg2[%c0_286, %c2_287, %c0_288, %c1_289] : memref<1x4x16x16xf32, #tpu.memory_space<vmem>>, vector<1x1x16x15xf32>
    %354 = vector.shape_cast %353 : vector<1x1x16x15xf32> to vector<16x15xf32>
    %c2_290 = arith.constant 2 : index
    %c0_291 = arith.constant 0 : index
    %c0_292 = arith.constant 0 : index
    %355 = vector.load %arg6[%c2_290, %c0_291, %c0_292] : memref<4x16x16xf32, #tpu.memory_space<vmem>>, vector<1x16x15xf32>
    %356 = vector.shape_cast %355 : vector<1x16x15xf32> to vector<16x15xf32>
    %357 = vector.broadcast %352 : f32 to vector<16x15xf32>
    %358 = arith.mulf %354, %357 : vector<16x15xf32>
    %359 = arith.addf %356, %358 : vector<16x15xf32>
    %c2_293 = arith.constant 2 : index
    %c0_294 = arith.constant 0 : index
    %c0_295 = arith.constant 0 : index
    %360 = vector.load %arg6[%c2_293, %c0_294, %c0_295] : memref<4x16x16xf32, #tpu.memory_space<vmem>>, vector<1x16x15xf32>
    %361 = vector.shape_cast %360 : vector<1x16x15xf32> to vector<16x15xf32>
    %362 = vector.shape_cast %359 : vector<16x15xf32> to vector<1x16x15xf32>
    tpu.vector_store %arg6[%c2_293, %c0_294, %c0_295], %362 {strides = array<i32>} : memref<4x16x16xf32, #tpu.memory_space<vmem>>, vector<1x16x15xf32>,
    %c6_i32_296 = arith.constant 6 : i32
    %363 = arith.addi %272, %c6_i32_296 : i32
    %c0_i32_297 = arith.constant 0 : i32
    %364 = arith.addi %363, %c0_i32_297 : i32
    %365 = arith.index_cast %364 : i32 to index
    %366 = memref.load %arg3[%365] : memref<36xf32, #tpu.memory_space<smem>>
    %c0_298 = arith.constant 0 : index
    %c2_299 = arith.constant 2 : index
    %c1_300 = arith.constant 1 : index
    %c0_301 = arith.constant 0 : index
    %367 = vector.load %arg2[%c0_298, %c2_299, %c1_300, %c0_301] : memref<1x4x16x16xf32, #tpu.memory_space<vmem>>, vector<1x1x15x15xf32>
    %368 = vector.shape_cast %367 : vector<1x1x15x15xf32> to vector<15x15xf32>
    %c2_302 = arith.constant 2 : index
    %c0_303 = arith.constant 0 : index
    %c1_304 = arith.constant 1 : index
    %369 = vector.load %arg6[%c2_302, %c0_303, %c1_304] : memref<4x16x16xf32, #tpu.memory_space<vmem>>, vector<1x15x15xf32>
    %370 = vector.shape_cast %369 : vector<1x15x15xf32> to vector<15x15xf32>
    %371 = vector.broadcast %366 : f32 to vector<15x15xf32>
    %372 = arith.mulf %368, %371 : vector<15x15xf32>
    %373 = arith.addf %370, %372 : vector<15x15xf32>
    %c2_305 = arith.constant 2 : index
    %c0_306 = arith.constant 0 : index
    %c1_307 = arith.constant 1 : index
    %374 = vector.load %arg6[%c2_305, %c0_306, %c1_307] : memref<4x16x16xf32, #tpu.memory_space<vmem>>, vector<1x15x15xf32>
    %375 = vector.shape_cast %374 : vector<1x15x15xf32> to vector<15x15xf32>
    %376 = vector.shape_cast %373 : vector<15x15xf32> to vector<1x15x15xf32>
    tpu.vector_store %arg6[%c2_305, %c0_306, %c1_307], %376 {strides = array<i32>} : memref<4x16x16xf32, #tpu.memory_space<vmem>>, vector<1x15x15xf32>,
    %c6_i32_308 = arith.constant 6 : i32
    %377 = arith.addi %272, %c6_i32_308 : i32
    %c1_i32_309 = arith.constant 1 : i32
    %378 = arith.addi %377, %c1_i32_309 : i32
    %379 = arith.index_cast %378 : i32 to index
    %380 = memref.load %arg3[%379] : memref<36xf32, #tpu.memory_space<smem>>
    %c0_310 = arith.constant 0 : index
    %c2_311 = arith.constant 2 : index
    %c1_312 = arith.constant 1 : index
    %c0_313 = arith.constant 0 : index
    %381 = vector.load %arg2[%c0_310, %c2_311, %c1_312, %c0_313] : memref<1x4x16x16xf32, #tpu.memory_space<vmem>>, vector<1x1x15x16xf32>
    %382 = vector.shape_cast %381 : vector<1x1x15x16xf32> to vector<15x16xf32>
    %c2_314 = arith.constant 2 : index
    %c0_315 = arith.constant 0 : index
    %c0_316 = arith.constant 0 : index
    %383 = vector.load %arg6[%c2_314, %c0_315, %c0_316] : memref<4x16x16xf32, #tpu.memory_space<vmem>>, vector<1x15x16xf32>
    %384 = vector.shape_cast %383 : vector<1x15x16xf32> to vector<15x16xf32>
    %385 = vector.broadcast %380 : f32 to vector<15x16xf32>
    %386 = arith.mulf %382, %385 : vector<15x16xf32>
    %387 = arith.addf %384, %386 : vector<15x16xf32>
    %c2_317 = arith.constant 2 : index
    %c0_318 = arith.constant 0 : index
    %c0_319 = arith.constant 0 : index
    %388 = vector.load %arg6[%c2_317, %c0_318, %c0_319] : memref<4x16x16xf32, #tpu.memory_space<vmem>>, vector<1x15x16xf32>
    %389 = vector.shape_cast %388 : vector<1x15x16xf32> to vector<15x16xf32>
    %390 = vector.shape_cast %387 : vector<15x16xf32> to vector<1x15x16xf32>
    tpu.vector_store %arg6[%c2_317, %c0_318, %c0_319], %390 {strides = array<i32>} : memref<4x16x16xf32, #tpu.memory_space<vmem>>, vector<1x15x16xf32>,
    %c6_i32_320 = arith.constant 6 : i32
    %391 = arith.addi %272, %c6_i32_320 : i32
    %c2_i32_321 = arith.constant 2 : i32
    %392 = arith.addi %391, %c2_i32_321 : i32
    %393 = arith.index_cast %392 : i32 to index
    %394 = memref.load %arg3[%393] : memref<36xf32, #tpu.memory_space<smem>>
    %c0_322 = arith.constant 0 : index
    %c2_323 = arith.constant 2 : index
    %c1_324 = arith.constant 1 : index
    %c1_325 = arith.constant 1 : index
    %395 = vector.load %arg2[%c0_322, %c2_323, %c1_324, %c1_325] : memref<1x4x16x16xf32, #tpu.memory_space<vmem>>, vector<1x1x15x15xf32>
    %396 = vector.shape_cast %395 : vector<1x1x15x15xf32> to vector<15x15xf32>
    %c2_326 = arith.constant 2 : index
    %c0_327 = arith.constant 0 : index
    %c0_328 = arith.constant 0 : index
    %397 = vector.load %arg6[%c2_326, %c0_327, %c0_328] : memref<4x16x16xf32, #tpu.memory_space<vmem>>, vector<1x15x15xf32>
    %398 = vector.shape_cast %397 : vector<1x15x15xf32> to vector<15x15xf32>
    %399 = vector.broadcast %394 : f32 to vector<15x15xf32>
    %400 = arith.mulf %396, %399 : vector<15x15xf32>
    %401 = arith.addf %398, %400 : vector<15x15xf32>
    %c2_329 = arith.constant 2 : index
    %c0_330 = arith.constant 0 : index
    %c0_331 = arith.constant 0 : index
    %402 = vector.load %arg6[%c2_329, %c0_330, %c0_331] : memref<4x16x16xf32, #tpu.memory_space<vmem>>, vector<1x15x15xf32>
    %403 = vector.shape_cast %402 : vector<1x15x15xf32> to vector<15x15xf32>
    %404 = vector.shape_cast %401 : vector<15x15xf32> to vector<1x15x15xf32>
    tpu.vector_store %arg6[%c2_329, %c0_330, %c0_331], %404 {strides = array<i32>} : memref<4x16x16xf32, #tpu.memory_space<vmem>>, vector<1x15x15xf32>,
    %c4_i32_332 = arith.constant 4 : i32
    %405 = arith.muli %arg1, %c4_i32_332 : i32
    %c3_i32_333 = arith.constant 3 : i32
    %406 = arith.addi %405, %c3_i32_333 : i32
    %c9_i32_334 = arith.constant 9 : i32
    %407 = arith.muli %406, %c9_i32_334 : i32
    %408 = arith.index_cast %406 : i32 to index
    %409 = memref.load %arg4[%408] : memref<4xf32, #tpu.memory_space<smem>>
    %410 = vector.broadcast %409 : f32 to vector<16x16xf32>
    %c3 = arith.constant 3 : index
    %c0_335 = arith.constant 0 : index
    %c0_336 = arith.constant 0 : index
    %411 = vector.load %arg6[%c3, %c0_335, %c0_336] : memref<4x16x16xf32, #tpu.memory_space<vmem>>, vector<1x16x16xf32>
    %412 = vector.shape_cast %411 : vector<1x16x16xf32> to vector<16x16xf32>
    %413 = vector.shape_cast %410 : vector<16x16xf32> to vector<1x16x16xf32>
    tpu.vector_store %arg6[%c3, %c0_335, %c0_336], %413 {strides = array<i32>} : memref<4x16x16xf32, #tpu.memory_space<vmem>>, vector<1x16x16xf32>,
    %c0_i32_337 = arith.constant 0 : i32
    %414 = arith.addi %407, %c0_i32_337 : i32
    %c0_i32_338 = arith.constant 0 : i32
    %415 = arith.addi %414, %c0_i32_338 : i32
    %416 = arith.index_cast %415 : i32 to index
    %417 = memref.load %arg3[%416] : memref<36xf32, #tpu.memory_space<smem>>
    %c0_339 = arith.constant 0 : index
    %c3_340 = arith.constant 3 : index
    %c0_341 = arith.constant 0 : index
    %c0_342 = arith.constant 0 : index
    %418 = vector.load %arg2[%c0_339, %c3_340, %c0_341, %c0_342] : memref<1x4x16x16xf32, #tpu.memory_space<vmem>>, vector<1x1x15x15xf32>
    %419 = vector.shape_cast %418 : vector<1x1x15x15xf32> to vector<15x15xf32>
    %c3_343 = arith.constant 3 : index
    %c1_344 = arith.constant 1 : index
    %c1_345 = arith.constant 1 : index
    %420 = vector.load %arg6[%c3_343, %c1_344, %c1_345] : memref<4x16x16xf32, #tpu.memory_space<vmem>>, vector<1x15x15xf32>
    %421 = vector.shape_cast %420 : vector<1x15x15xf32> to vector<15x15xf32>
    %422 = vector.broadcast %417 : f32 to vector<15x15xf32>
    %423 = arith.mulf %419, %422 : vector<15x15xf32>
    %424 = arith.addf %421, %423 : vector<15x15xf32>
    %c3_346 = arith.constant 3 : index
    %c1_347 = arith.constant 1 : index
    %c1_348 = arith.constant 1 : index
    %425 = vector.load %arg6[%c3_346, %c1_347, %c1_348] : memref<4x16x16xf32, #tpu.memory_space<vmem>>, vector<1x15x15xf32>
    %426 = vector.shape_cast %425 : vector<1x15x15xf32> to vector<15x15xf32>
    %427 = vector.shape_cast %424 : vector<15x15xf32> to vector<1x15x15xf32>
    tpu.vector_store %arg6[%c3_346, %c1_347, %c1_348], %427 {strides = array<i32>} : memref<4x16x16xf32, #tpu.memory_space<vmem>>, vector<1x15x15xf32>,
    %c0_i32_349 = arith.constant 0 : i32
    %428 = arith.addi %407, %c0_i32_349 : i32
    %c1_i32_350 = arith.constant 1 : i32
    %429 = arith.addi %428, %c1_i32_350 : i32
    %430 = arith.index_cast %429 : i32 to index
    %431 = memref.load %arg3[%430] : memref<36xf32, #tpu.memory_space<smem>>
    %c0_351 = arith.constant 0 : index
    %c3_352 = arith.constant 3 : index
    %c0_353 = arith.constant 0 : index
    %c0_354 = arith.constant 0 : index
    %432 = vector.load %arg2[%c0_351, %c3_352, %c0_353, %c0_354] : memref<1x4x16x16xf32, #tpu.memory_space<vmem>>, vector<1x1x15x16xf32>
    %433 = vector.shape_cast %432 : vector<1x1x15x16xf32> to vector<15x16xf32>
    %c3_355 = arith.constant 3 : index
    %c1_356 = arith.constant 1 : index
    %c0_357 = arith.constant 0 : index
    %434 = vector.load %arg6[%c3_355, %c1_356, %c0_357] : memref<4x16x16xf32, #tpu.memory_space<vmem>>, vector<1x15x16xf32>
    %435 = vector.shape_cast %434 : vector<1x15x16xf32> to vector<15x16xf32>
    %436 = vector.broadcast %431 : f32 to vector<15x16xf32>
    %437 = arith.mulf %433, %436 : vector<15x16xf32>
    %438 = arith.addf %435, %437 : vector<15x16xf32>
    %c3_358 = arith.constant 3 : index
    %c1_359 = arith.constant 1 : index
    %c0_360 = arith.constant 0 : index
    %439 = vector.load %arg6[%c3_358, %c1_359, %c0_360] : memref<4x16x16xf32, #tpu.memory_space<vmem>>, vector<1x15x16xf32>
    %440 = vector.shape_cast %439 : vector<1x15x16xf32> to vector<15x16xf32>
    %441 = vector.shape_cast %438 : vector<15x16xf32> to vector<1x15x16xf32>
    tpu.vector_store %arg6[%c3_358, %c1_359, %c0_360], %441 {strides = array<i32>} : memref<4x16x16xf32, #tpu.memory_space<vmem>>, vector<1x15x16xf32>,
    %c0_i32_361 = arith.constant 0 : i32
    %442 = arith.addi %407, %c0_i32_361 : i32
    %c2_i32_362 = arith.constant 2 : i32
    %443 = arith.addi %442, %c2_i32_362 : i32
    %444 = arith.index_cast %443 : i32 to index
    %445 = memref.load %arg3[%444] : memref<36xf32, #tpu.memory_space<smem>>
    %c0_363 = arith.constant 0 : index
    %c3_364 = arith.constant 3 : index
    %c0_365 = arith.constant 0 : index
    %c1_366 = arith.constant 1 : index
    %446 = vector.load %arg2[%c0_363, %c3_364, %c0_365, %c1_366] : memref<1x4x16x16xf32, #tpu.memory_space<vmem>>, vector<1x1x15x15xf32>
    %447 = vector.shape_cast %446 : vector<1x1x15x15xf32> to vector<15x15xf32>
    %c3_367 = arith.constant 3 : index
    %c1_368 = arith.constant 1 : index
    %c0_369 = arith.constant 0 : index
    %448 = vector.load %arg6[%c3_367, %c1_368, %c0_369] : memref<4x16x16xf32, #tpu.memory_space<vmem>>, vector<1x15x15xf32>
    %449 = vector.shape_cast %448 : vector<1x15x15xf32> to vector<15x15xf32>
    %450 = vector.broadcast %445 : f32 to vector<15x15xf32>
    %451 = arith.mulf %447, %450 : vector<15x15xf32>
    %452 = arith.addf %449, %451 : vector<15x15xf32>
    %c3_370 = arith.constant 3 : index
    %c1_371 = arith.constant 1 : index
    %c0_372 = arith.constant 0 : index
    %453 = vector.load %arg6[%c3_370, %c1_371, %c0_372] : memref<4x16x16xf32, #tpu.memory_space<vmem>>, vector<1x15x15xf32>
    %454 = vector.shape_cast %453 : vector<1x15x15xf32> to vector<15x15xf32>
    %455 = vector.shape_cast %452 : vector<15x15xf32> to vector<1x15x15xf32>
    tpu.vector_store %arg6[%c3_370, %c1_371, %c0_372], %455 {strides = array<i32>} : memref<4x16x16xf32, #tpu.memory_space<vmem>>, vector<1x15x15xf32>,
    %c3_i32_373 = arith.constant 3 : i32
    %456 = arith.addi %407, %c3_i32_373 : i32
    %c0_i32_374 = arith.constant 0 : i32
    %457 = arith.addi %456, %c0_i32_374 : i32
    %458 = arith.index_cast %457 : i32 to index
    %459 = memref.load %arg3[%458] : memref<36xf32, #tpu.memory_space<smem>>
    %c0_375 = arith.constant 0 : index
    %c3_376 = arith.constant 3 : index
    %c0_377 = arith.constant 0 : index
    %c0_378 = arith.constant 0 : index
    %460 = vector.load %arg2[%c0_375, %c3_376, %c0_377, %c0_378] : memref<1x4x16x16xf32, #tpu.memory_space<vmem>>, vector<1x1x16x15xf32>
    %461 = vector.shape_cast %460 : vector<1x1x16x15xf32> to vector<16x15xf32>
    %c3_379 = arith.constant 3 : index
    %c0_380 = arith.constant 0 : index
    %c1_381 = arith.constant 1 : index
    %462 = vector.load %arg6[%c3_379, %c0_380, %c1_381] : memref<4x16x16xf32, #tpu.memory_space<vmem>>, vector<1x16x15xf32>
    %463 = vector.shape_cast %462 : vector<1x16x15xf32> to vector<16x15xf32>
    %464 = vector.broadcast %459 : f32 to vector<16x15xf32>
    %465 = arith.mulf %461, %464 : vector<16x15xf32>
    %466 = arith.addf %463, %465 : vector<16x15xf32>
    %c3_382 = arith.constant 3 : index
    %c0_383 = arith.constant 0 : index
    %c1_384 = arith.constant 1 : index
    %467 = vector.load %arg6[%c3_382, %c0_383, %c1_384] : memref<4x16x16xf32, #tpu.memory_space<vmem>>, vector<1x16x15xf32>
    %468 = vector.shape_cast %467 : vector<1x16x15xf32> to vector<16x15xf32>
    %469 = vector.shape_cast %466 : vector<16x15xf32> to vector<1x16x15xf32>
    tpu.vector_store %arg6[%c3_382, %c0_383, %c1_384], %469 {strides = array<i32>} : memref<4x16x16xf32, #tpu.memory_space<vmem>>, vector<1x16x15xf32>,
    %c3_i32_385 = arith.constant 3 : i32
    %470 = arith.addi %407, %c3_i32_385 : i32
    %c1_i32_386 = arith.constant 1 : i32
    %471 = arith.addi %470, %c1_i32_386 : i32
    %472 = arith.index_cast %471 : i32 to index
    %473 = memref.load %arg3[%472] : memref<36xf32, #tpu.memory_space<smem>>
    %c0_387 = arith.constant 0 : index
    %c3_388 = arith.constant 3 : index
    %c0_389 = arith.constant 0 : index
    %c0_390 = arith.constant 0 : index
    %474 = vector.load %arg2[%c0_387, %c3_388, %c0_389, %c0_390] : memref<1x4x16x16xf32, #tpu.memory_space<vmem>>, vector<1x1x16x16xf32>
    %475 = vector.shape_cast %474 : vector<1x1x16x16xf32> to vector<16x16xf32>
    %c3_391 = arith.constant 3 : index
    %c0_392 = arith.constant 0 : index
    %c0_393 = arith.constant 0 : index
    %476 = vector.load %arg6[%c3_391, %c0_392, %c0_393] : memref<4x16x16xf32, #tpu.memory_space<vmem>>, vector<1x16x16xf32>
    %477 = vector.shape_cast %476 : vector<1x16x16xf32> to vector<16x16xf32>
    %478 = vector.broadcast %473 : f32 to vector<16x16xf32>
    %479 = arith.mulf %475, %478 : vector<16x16xf32>
    %480 = arith.addf %477, %479 : vector<16x16xf32>
    %c3_394 = arith.constant 3 : index
    %c0_395 = arith.constant 0 : index
    %c0_396 = arith.constant 0 : index
    %481 = vector.load %arg6[%c3_394, %c0_395, %c0_396] : memref<4x16x16xf32, #tpu.memory_space<vmem>>, vector<1x16x16xf32>
    %482 = vector.shape_cast %481 : vector<1x16x16xf32> to vector<16x16xf32>
    %483 = vector.shape_cast %480 : vector<16x16xf32> to vector<1x16x16xf32>
    tpu.vector_store %arg6[%c3_394, %c0_395, %c0_396], %483 {strides = array<i32>} : memref<4x16x16xf32, #tpu.memory_space<vmem>>, vector<1x16x16xf32>,
    %c3_i32_397 = arith.constant 3 : i32
    %484 = arith.addi %407, %c3_i32_397 : i32
    %c2_i32_398 = arith.constant 2 : i32
    %485 = arith.addi %484, %c2_i32_398 : i32
    %486 = arith.index_cast %485 : i32 to index
    %487 = memref.load %arg3[%486] : memref<36xf32, #tpu.memory_space<smem>>
    %c0_399 = arith.constant 0 : index
    %c3_400 = arith.constant 3 : index
    %c0_401 = arith.constant 0 : index
    %c1_402 = arith.constant 1 : index
    %488 = vector.load %arg2[%c0_399, %c3_400, %c0_401, %c1_402] : memref<1x4x16x16xf32, #tpu.memory_space<vmem>>, vector<1x1x16x15xf32>
    %489 = vector.shape_cast %488 : vector<1x1x16x15xf32> to vector<16x15xf32>
    %c3_403 = arith.constant 3 : index
    %c0_404 = arith.constant 0 : index
    %c0_405 = arith.constant 0 : index
    %490 = vector.load %arg6[%c3_403, %c0_404, %c0_405] : memref<4x16x16xf32, #tpu.memory_space<vmem>>, vector<1x16x15xf32>
    %491 = vector.shape_cast %490 : vector<1x16x15xf32> to vector<16x15xf32>
    %492 = vector.broadcast %487 : f32 to vector<16x15xf32>
    %493 = arith.mulf %489, %492 : vector<16x15xf32>
    %494 = arith.addf %491, %493 : vector<16x15xf32>
    %c3_406 = arith.constant 3 : index
    %c0_407 = arith.constant 0 : index
    %c0_408 = arith.constant 0 : index
    %495 = vector.load %arg6[%c3_406, %c0_407, %c0_408] : memref<4x16x16xf32, #tpu.memory_space<vmem>>, vector<1x16x15xf32>
    %496 = vector.shape_cast %495 : vector<1x16x15xf32> to vector<16x15xf32>
    %497 = vector.shape_cast %494 : vector<16x15xf32> to vector<1x16x15xf32>
    tpu.vector_store %arg6[%c3_406, %c0_407, %c0_408], %497 {strides = array<i32>} : memref<4x16x16xf32, #tpu.memory_space<vmem>>, vector<1x16x15xf32>,
    %c6_i32_409 = arith.constant 6 : i32
    %498 = arith.addi %407, %c6_i32_409 : i32
    %c0_i32_410 = arith.constant 0 : i32
    %499 = arith.addi %498, %c0_i32_410 : i32
    %500 = arith.index_cast %499 : i32 to index
    %501 = memref.load %arg3[%500] : memref<36xf32, #tpu.memory_space<smem>>
    %c0_411 = arith.constant 0 : index
    %c3_412 = arith.constant 3 : index
    %c1_413 = arith.constant 1 : index
    %c0_414 = arith.constant 0 : index
    %502 = vector.load %arg2[%c0_411, %c3_412, %c1_413, %c0_414] : memref<1x4x16x16xf32, #tpu.memory_space<vmem>>, vector<1x1x15x15xf32>
    %503 = vector.shape_cast %502 : vector<1x1x15x15xf32> to vector<15x15xf32>
    %c3_415 = arith.constant 3 : index
    %c0_416 = arith.constant 0 : index
    %c1_417 = arith.constant 1 : index
    %504 = vector.load %arg6[%c3_415, %c0_416, %c1_417] : memref<4x16x16xf32, #tpu.memory_space<vmem>>, vector<1x15x15xf32>
    %505 = vector.shape_cast %504 : vector<1x15x15xf32> to vector<15x15xf32>
    %506 = vector.broadcast %501 : f32 to vector<15x15xf32>
    %507 = arith.mulf %503, %506 : vector<15x15xf32>
    %508 = arith.addf %505, %507 : vector<15x15xf32>
    %c3_418 = arith.constant 3 : index
    %c0_419 = arith.constant 0 : index
    %c1_420 = arith.constant 1 : index
    %509 = vector.load %arg6[%c3_418, %c0_419, %c1_420] : memref<4x16x16xf32, #tpu.memory_space<vmem>>, vector<1x15x15xf32>
    %510 = vector.shape_cast %509 : vector<1x15x15xf32> to vector<15x15xf32>
    %511 = vector.shape_cast %508 : vector<15x15xf32> to vector<1x15x15xf32>
    tpu.vector_store %arg6[%c3_418, %c0_419, %c1_420], %511 {strides = array<i32>} : memref<4x16x16xf32, #tpu.memory_space<vmem>>, vector<1x15x15xf32>,
    %c6_i32_421 = arith.constant 6 : i32
    %512 = arith.addi %407, %c6_i32_421 : i32
    %c1_i32_422 = arith.constant 1 : i32
    %513 = arith.addi %512, %c1_i32_422 : i32
    %514 = arith.index_cast %513 : i32 to index
    %515 = memref.load %arg3[%514] : memref<36xf32, #tpu.memory_space<smem>>
    %c0_423 = arith.constant 0 : index
    %c3_424 = arith.constant 3 : index
    %c1_425 = arith.constant 1 : index
    %c0_426 = arith.constant 0 : index
    %516 = vector.load %arg2[%c0_423, %c3_424, %c1_425, %c0_426] : memref<1x4x16x16xf32, #tpu.memory_space<vmem>>, vector<1x1x15x16xf32>
    %517 = vector.shape_cast %516 : vector<1x1x15x16xf32> to vector<15x16xf32>
    %c3_427 = arith.constant 3 : index
    %c0_428 = arith.constant 0 : index
    %c0_429 = arith.constant 0 : index
    %518 = vector.load %arg6[%c3_427, %c0_428, %c0_429] : memref<4x16x16xf32, #tpu.memory_space<vmem>>, vector<1x15x16xf32>
    %519 = vector.shape_cast %518 : vector<1x15x16xf32> to vector<15x16xf32>
    %520 = vector.broadcast %515 : f32 to vector<15x16xf32>
    %521 = arith.mulf %517, %520 : vector<15x16xf32>
    %522 = arith.addf %519, %521 : vector<15x16xf32>
    %c3_430 = arith.constant 3 : index
    %c0_431 = arith.constant 0 : index
    %c0_432 = arith.constant 0 : index
    %523 = vector.load %arg6[%c3_430, %c0_431, %c0_432] : memref<4x16x16xf32, #tpu.memory_space<vmem>>, vector<1x15x16xf32>
    %524 = vector.shape_cast %523 : vector<1x15x16xf32> to vector<15x16xf32>
    %525 = vector.shape_cast %522 : vector<15x16xf32> to vector<1x15x16xf32>
    tpu.vector_store %arg6[%c3_430, %c0_431, %c0_432], %525 {strides = array<i32>} : memref<4x16x16xf32, #tpu.memory_space<vmem>>, vector<1x15x16xf32>,
    %c6_i32_433 = arith.constant 6 : i32
    %526 = arith.addi %407, %c6_i32_433 : i32
    %c2_i32_434 = arith.constant 2 : i32
    %527 = arith.addi %526, %c2_i32_434 : i32
    %528 = arith.index_cast %527 : i32 to index
    %529 = memref.load %arg3[%528] : memref<36xf32, #tpu.memory_space<smem>>
    %c0_435 = arith.constant 0 : index
    %c3_436 = arith.constant 3 : index
    %c1_437 = arith.constant 1 : index
    %c1_438 = arith.constant 1 : index
    %530 = vector.load %arg2[%c0_435, %c3_436, %c1_437, %c1_438] : memref<1x4x16x16xf32, #tpu.memory_space<vmem>>, vector<1x1x15x15xf32>
    %531 = vector.shape_cast %530 : vector<1x1x15x15xf32> to vector<15x15xf32>
    %c3_439 = arith.constant 3 : index
    %c0_440 = arith.constant 0 : index
    %c0_441 = arith.constant 0 : index
    %532 = vector.load %arg6[%c3_439, %c0_440, %c0_441] : memref<4x16x16xf32, #tpu.memory_space<vmem>>, vector<1x15x15xf32>
    %533 = vector.shape_cast %532 : vector<1x15x15xf32> to vector<15x15xf32>
    %534 = vector.broadcast %529 : f32 to vector<15x15xf32>
    %535 = arith.mulf %531, %534 : vector<15x15xf32>
    %536 = arith.addf %533, %535 : vector<15x15xf32>
    %c3_442 = arith.constant 3 : index
    %c0_443 = arith.constant 0 : index
    %c0_444 = arith.constant 0 : index
    %537 = vector.load %arg6[%c3_442, %c0_443, %c0_444] : memref<4x16x16xf32, #tpu.memory_space<vmem>>, vector<1x15x15xf32>
    %538 = vector.shape_cast %537 : vector<1x15x15xf32> to vector<15x15xf32>
    %539 = vector.shape_cast %536 : vector<15x15xf32> to vector<1x15x15xf32>
    tpu.vector_store %arg6[%c3_442, %c0_443, %c0_444], %539 {strides = array<i32>} : memref<4x16x16xf32, #tpu.memory_space<vmem>>, vector<1x15x15xf32>,
    %c0_445 = arith.constant 0 : index
    %c0_446 = arith.constant 0 : index
    %c0_447 = arith.constant 0 : index
    %540 = vector.load %arg6[%c0_445, %c0_446, %c0_447] : memref<4x16x16xf32, #tpu.memory_space<vmem>>, vector<4x16x16xf32>
    %c0_448 = arith.constant 0 : index
    %c0_449 = arith.constant 0 : index
    %c0_450 = arith.constant 0 : index
    %c0_451 = arith.constant 0 : index
    %541 = vector.load %arg5[%c0_448, %c0_449, %c0_450, %c0_451] : memref<1x4x16x16xf32, #tpu.memory_space<vmem>>, vector<1x4x16x16xf32>
    %542 = vector.shape_cast %541 : vector<1x4x16x16xf32> to vector<4x16x16xf32>
    %543 = vector.shape_cast %540 : vector<4x16x16xf32> to vector<1x4x16x16xf32>
    tpu.vector_store %arg5[%c0_448, %c0_449, %c0_450, %c0_451], %543 {strides = array<i32>} : memref<1x4x16x16xf32, #tpu.memory_space<vmem>>, vector<1x4x16x16xf32>,
    return
  }
  func.func @transform_0(%arg0: i32, %arg1: i32) -> (i32, i32, i32, i32) {
    %c0_i32 = arith.constant 0 : i32
    %c0_i32_0 = arith.constant 0 : i32
    %c0_i32_1 = arith.constant 0 : i32
    return %arg0, %arg1, %c0_i32, %c0_i32_0 : i32, i32, i32, i32
  }
  func.func @transform_1(%arg0: i32, %arg1: i32) -> i32 {
    %c0_i32 = arith.constant 0 : i32
    %c0_i32_0 = arith.constant 0 : i32
    return %c0_i32 : i32
  }
  func.func @transform_2(%arg0: i32, %arg1: i32) -> i32 {
    %c0_i32 = arith.constant 0 : i32
    %c0_i32_0 = arith.constant 0 : i32
    return %c0_i32 : i32
  }
  func.func @transform_3(%arg0: i32, %arg1: i32) -> (i32, i32, i32, i32) {
    %c0_i32 = arith.constant 0 : i32
    %c0_i32_0 = arith.constant 0 : i32
    %c0_i32_1 = arith.constant 0 : i32
    return %arg0, %arg1, %c0_i32, %c0_i32_0 : i32, i32, i32, i32
  }
}

</mosaic_0001>

<llo_original>
// kernel: tpu_custom_call.1
$region0: #{tpu_custom_call.1}
  #allocation0 [shape = 'u32[]', space=smem, size = 0x4, offset = 0x4, fixed_abs, tag = 'smem constant byte address 0x4 - core index']
  #allocation1 [shape = 'u32[144,128]{1,0:T(1,128)}', space=vmem, size = 0x12000, scoped, tag = 'internal scratch']
  #allocation2 [shape = 'f32[4,16,16]{2,1,0:T(8,128)}', space=vmem, size = 0x8000, scoped, tag = 'scratch operand']
  %s0 = inlined_call_operand.hbm [shape: f32[2,4,16,16], index: 0, kind: input, shape index: {}]
  %s1 = inlined_call_operand.vmem [shape: f32[36], index: 1, kind: input, shape index: {}]
  %s2 = inlined_call_operand.vmem [shape: f32[4], index: 2, kind: input, shape index: {}]
  %s3 = inlined_call_operand.hbm [shape: f32[2,4,16,16], index: 3, kind: output, shape index: {}]
  %s4 = sld [smem:[#allocation0]]
  $region57: #{tpu_custom_call.1} parent=0
    _
  %s6 = ssub.s32 1, %s4
  %s7 = scalar_select 0, %s6, %s4
  $region1: #{tpu_custom_call.1} parent=0
    #allocation3 [shape = 'u8[65536]{0}', space=vmem, size = 0x10000, scoped, tag = 'input window, operand 0']
    #allocation4 [shape = 's32[2]{0}', space=sflag, size = 0x8, scoped, tag = 'scoped memory for tpu_custom_call.1']
    #allocation5 [shape = 's32[2]{0}', space=sflag, size = 0x8, scoped, tag = 'scoped memory for tpu_custom_call.1']
    #allocation6 [shape = 's32[2]{0}', space=sflag, size = 0x8, scoped, tag = 'scoped memory for tpu_custom_call.1']
    #allocation7 [shape = 'u8[512]{0}', space=smem, size = 0x200, scoped, tag = 'input window, operand 1, single buffered']
    #allocation8 [shape = 'u8[512]{0}', space=smem, size = 0x200, scoped, tag = 'input window, operand 2, single buffered']
    #allocation9 [shape = 's32[1]{0}', space=sflag, size = 0x4, scoped, tag = 'scoped memory for tpu_custom_call.1']
    #allocation10 [shape = 'u8[65536]{0}', space=vmem, size = 0x10000, scoped, tag = 'output window, operand 0']
    %8 = vsyncpa [#allocation4], 0
    %s9 = scalar_lea.sflag [#allocation4], 1
    %10 = vsyncpa %s9, 0
    %11 = vsyncpa [#allocation6], 0
    %12 = vsyncpa [#allocation9], 0
    %13 = vsyncpa [#allocation5], 0
    %s14 = scalar_lea.sflag [#allocation5], 1
    %15 = vsyncpa %s14, 0
    loop: start=0, step=1, limit=4
    $region2: #{tpu_custom_call.1} parent=1 // loop_pre_header
      _
    $region3: #{tpu_custom_call.1} parent=1 // loop_header
      %s17 = sphi 0, %s21
      %p18 = scmp.ge.s32.totalorder %s17, 4
      %s24 = sphi 0, %s36
      %s25 = sphi 0, %s32
      %s26 = sphi 0, %s24
      %s27 = sphi 0, %s25
      %s28 = sphi 0, %s26
      %s29 = sphi 0, %s27
      %s41 = sphi 0, %s43
      %s44 = sphi 0, %s41
      %s45 = sphi 0, %s44
      %s61 = sphi 0, %s45
      %s65 = sphi 0, %s65
      %s67 = sphi 0, %s65
      %s68 = sphi 0, %s67
      %s82 = sphi 0, %s68
      %s86 = sphi 0, %s86
      %s88 = sphi 0, %s86
      %s89 = sphi 0, %s88
      %s103 = sphi 0, %s89
      %s111 = sphi 0, %s113
      %s114 = sphi 0, %s111
      %s115 = sphi 0, %s114
      %s131 = sphi 0, %s115
    $region4: #{tpu_custom_call.1} parent=1 // loop_header_branch
      %20 = sbr.rel (%p18) target = $region8
    $region5: #{tpu_custom_call.1} parent=1 // loop_body
      %s22 = ssub.s32 %s17, 1
      %s23 = ssub.s32 %s17, 2
      %s30 = sadd.s32 1, %s25
      %p31 = scmp.ge.s32.totalorder %s30, 1
      %s32 = scalar_select %p31, 0, %s30
      %s33 = sadd.s32 1, %s24
      %s34 = scalar_select %p31, %s33, %s24
      %p35 = scmp.ge.s32.totalorder %s34, 2
      %s36 = scalar_select %p35, 0, %s34
      %s37 = ssub.s32 %s24, %s36
      %s38 = ssub.s32 %s25, %s32
      %s39 = sor.u32 %s37, %s38
      %p40 = scmp.eq.s32.totalorder %s39, 0
      %s42 = sadd.s32 %s41, 1
      %s43 = scalar_select %p40, %s41, %s42
      %p46 = pneg %p40
      %p47 = scmp.eq.s32.totalorder %s17, 1
      %p48 = por %p46, %p47
      %p49 = scmp.ne.s32.totalorder %s41, %s44
      %p50 = scmp.eq.s32.totalorder %s17, 0
      %p51 = por %p49, %p50
      %p52 = scmp.ne.s32.totalorder %s41, %s44
      %p53 = scmp.eq.s32.totalorder %s22, 1
      %p54 = por %p52, %p53
      %p55 = scmp.ne.s32.totalorder %s44, %s45
      %p56 = scmp.eq.s32.totalorder %s22, 0
      %p57 = por %p55, %p56
      %p58 = scmp.ne.s32.totalorder %s44, %s45
      %p59 = scmp.eq.s32.totalorder %s23, 1
      %p60 = por %p58, %p59
      %p62 = scmp.ne.s32.totalorder %s45, %s61
      %p63 = scmp.eq.s32.totalorder %s23, 0
      %p64 = por %p62, %p63
      %s66 = sadd.s32 %s65, 1
      %p69 = scmp.eq.s32.totalorder %s17, 1
      %p70 = scmp.ne.s32.totalorder %s65, %s67
      %p71 = scmp.eq.s32.totalorder %s17, 0
      %p72 = por %p70, %p71
      %p73 = scmp.ne.s32.totalorder %s65, %s67
      %p74 = scmp.eq.s32.totalorder %s22, 1
      %p75 = por %p73, %p74
      %p76 = scmp.ne.s32.totalorder %s67, %s68
      %p77 = scmp.eq.s32.totalorder %s22, 0
      %p78 = por %p76, %p77
      %p79 = scmp.ne.s32.totalorder %s67, %s68
      %p80 = scmp.eq.s32.totalorder %s23, 1
      %p81 = por %p79, %p80
      %p83 = scmp.ne.s32.totalorder %s68, %s82
      %p84 = scmp.eq.s32.totalorder %s23, 0
      %p85 = por %p83, %p84
      %s87 = sadd.s32 %s86, 1
      %p90 = scmp.eq.s32.totalorder %s17, 1
      %p91 = scmp.ne.s32.totalorder %s86, %s88
      %p92 = scmp.eq.s32.totalorder %s17, 0
      %p93 = por %p91, %p92
      %p94 = scmp.ne.s32.totalorder %s86, %s88
      %p95 = scmp.eq.s32.totalorder %s22, 1
      %p96 = por %p94, %p95
      %p97 = scmp.ne.s32.totalorder %s88, %s89
      %p98 = scmp.eq.s32.totalorder %s22, 0
      %p99 = por %p97, %p98
      %p100 = scmp.ne.s32.totalorder %s88, %s89
      %p101 = scmp.eq.s32.totalorder %s23, 1
      %p102 = por %p100, %p101
      %p104 = scmp.ne.s32.totalorder %s89, %s103
      %p105 = scmp.eq.s32.totalorder %s23, 0
      %p106 = por %p104, %p105
      %s107 = ssub.s32 %s24, %s36
      %s108 = ssub.s32 %s25, %s32
      %s109 = sor.u32 %s107, %s108
      %p110 = scmp.eq.s32.totalorder %s109, 0
      %s112 = sadd.s32 %s111, 1
      %s113 = scalar_select %p110, %s111, %s112
      %p116 = pneg %p110
      %p117 = scmp.eq.s32.totalorder %s17, 1
      %p118 = por %p116, %p117
      %p119 = scmp.ne.s32.totalorder %s111, %s114
      %p120 = scmp.eq.s32.totalorder %s17, 0
      %p121 = por %p119, %p120
      %p122 = scmp.ne.s32.totalorder %s111, %s114
      %p123 = scmp.eq.s32.totalorder %s22, 1
      %p124 = por %p122, %p123
      %p125 = scmp.ne.s32.totalorder %s114, %s115
      %p126 = scmp.eq.s32.totalorder %s22, 0
      %p127 = por %p125, %p126
      %p128 = scmp.ne.s32.totalorder %s114, %s115
      %p129 = scmp.eq.s32.totalorder %s23, 1
      %p130 = por %p128, %p129
      %p132 = scmp.ne.s32.totalorder %s115, %s131
      %p133 = scmp.eq.s32.totalorder %s23, 0
      %p134 = por %p132, %p133
      %p135 = scmp.le.s32.totalorder 1, %s17
      %p136 = scmp.lt.s32.totalorder %s17, 3
      %p137 = pnand %p135, %p136
      %p138 = pneg %p137
      // Predicated region
      $region9: #{tpu_custom_call.1} parent=5 // pred_check
        _
      $region10: #{tpu_custom_call.1} parent=5 // pred_check_branch
        %140 = sbr.rel (%p137) target = $region12
      $region11: #{tpu_custom_call.1} parent=5 // pred_region
        %s141 = ssub.s32 %s17, 1
        // Predicated region
        $region13: #{tpu_custom_call.1} parent=11 // pred_check
          %p142 = pneg %p78
        $region14: #{tpu_custom_call.1} parent=11 // pred_check_branch
          %144 = sbr.rel (%p142) target = $region16
        $region15: #{tpu_custom_call.1} parent=11 // pred_region
          %s146 = ssub.s32 16, 16
          %147 = vsyncadd [#allocation6], %s146
          %s149 = sshll.u32 %s1, 4
          %s150 = int_to_ptr.vmem [resolvable:$true] %s149
          %152 = dma.vmem_to_smem %s150, 16, [#allocation7], [#allocation6]
        $region16: #{tpu_custom_call.1} parent=11 // pred_fallthru
          _
        // Predicated region
        $region17: #{tpu_custom_call.1} parent=11 // pred_check
          %p153 = pneg %p99
        $region18: #{tpu_custom_call.1} parent=11 // pred_check_branch
          %155 = sbr.rel (%p153) target = $region20
        $region19: #{tpu_custom_call.1} parent=11 // pred_region
          %s157 = ssub.s32 16, 16
          %158 = vsyncadd [#allocation9], %s157
          %s160 = sshll.u32 %s2, 4
          %s161 = int_to_ptr.vmem [resolvable:$true] %s160
          %163 = dma.vmem_to_smem %s161, 16, [#allocation8], [#allocation9]
        $region20: #{tpu_custom_call.1} parent=11 // pred_fallthru
          _
      $region12: #{tpu_custom_call.1} parent=5 // pred_fallthru
        _
      %p164 = scmp.lt.s32.totalorder %s17, 2
      // Predicated region
      $region21: #{tpu_custom_call.1} parent=5 // pred_check
        %p165 = pneg %p164
      $region22: #{tpu_custom_call.1} parent=5 // pred_check_branch
        %167 = sbr.rel (%p165) target = $region24
      $region23: #{tpu_custom_call.1} parent=5 // pred_region
        // Predicated region
        $region25: #{tpu_custom_call.1} parent=23 // pred_check
          %p168 = pneg %p51
        $region26: #{tpu_custom_call.1} parent=23 // pred_check_branch
          %170 = sbr.rel (%p168) target = $region28
        $region27: #{tpu_custom_call.1} parent=23 // pred_region
          %s171 = sand.u32 %s41, 1
          %s172 = scalar_lea.sflag [#allocation4], %s171
          %s173 = sand.u32 %s41, 1
          %s174 = smul.addr %s173, 64
          %s175 = scalar_lea.vmem [#allocation3], %s174
          %s176 = smul.u32 4, %s25
          %s178 = ssub.s32 1024, 1024
          %179 = vsyncadd %s172, %s178
          %s180 = smul.addr %s176, 2
          %s181 = smul.addr %s24, 8
          %s182 = sadd.s32 %s180, %s181
          %s183 = smul.addr %s182, 128
          %s184 = scalar_lea.hbm %s0, %s183
          %s185 = sshll.u32 %s175, 4
          %s186 = int_to_ptr.vmem [resolvable:$true] %s185
          %191 = dma.hbm_to_vmem [thread:$0]  %s184, 1024, %s186, %s172, 128, 128, 8
        $region28: #{tpu_custom_call.1} parent=23 // pred_fallthru
          _
      $region24: #{tpu_custom_call.1} parent=5 // pred_fallthru
        _
      %p192 = scmp.le.s32.totalorder 1, %s17
      %p193 = scmp.lt.s32.totalorder %s17, 3
      %p194 = pnand %p192, %p193
      %p195 = pneg %p194
      // Predicated region
      $region29: #{tpu_custom_call.1} parent=5 // pred_check
        _
      $region30: #{tpu_custom_call.1} parent=5 // pred_check_branch
        %197 = sbr.rel (%p194) target = $region32
      $region31: #{tpu_custom_call.1} parent=5 // pred_region
        %s198 = ssub.s32 %s17, 1
        %s199 = sand.u32 %s44, 1
        %s200 = scalar_lea.sflag [#allocation4], %s199
        %s201 = sand.u32 %s44, 1
        %s202 = smul.addr %s201, 64
        %s203 = scalar_lea.vmem [#allocation3], %s202
        // Predicated region
        $region33: #{tpu_custom_call.1} parent=31 // pred_check
          %p204 = pneg %p57
        $region34: #{tpu_custom_call.1} parent=31 // pred_check_branch
          %206 = sbr.rel (%p204) target = $region36
        $region35: #{tpu_custom_call.1} parent=31 // pred_region
          %207 = dma.done %s200, 1024
        $region36: #{tpu_custom_call.1} parent=31 // pred_fallthru
          _
        // Predicated region
        $region37: #{tpu_custom_call.1} parent=31 // pred_check
          %p208 = pneg %p78
        $region38: #{tpu_custom_call.1} parent=31 // pred_check_branch
          %210 = sbr.rel (%p208) target = $region40
        $region39: #{tpu_custom_call.1} parent=31 // pred_region
          %211 = dma.done [#allocation6], 16
        $region40: #{tpu_custom_call.1} parent=31 // pred_fallthru
          _
        // Predicated region
        $region41: #{tpu_custom_call.1} parent=31 // pred_check
          %p212 = pneg %p99
        $region42: #{tpu_custom_call.1} parent=31 // pred_check_branch
          %214 = sbr.rel (%p212) target = $region44
        $region43: #{tpu_custom_call.1} parent=31 // pred_region
          %215 = dma.done [#allocation9], 16
        $region44: #{tpu_custom_call.1} parent=31 // pred_fallthru
          _
        %216 = sfence
        %s217 = sand.u32 %s44, 1
        %s218 = scalar_lea.sflag [#allocation4], %s217
        %s219 = sand.u32 %s44, 1
        %s220 = smul.addr %s219, 64
        %s221 = scalar_lea.vmem [#allocation3], %s220
        %p222 = pneg %p57
        %p223 = pneg %p54
        %p224 = pneg %p78
        %p225 = pneg %p75
        %p226 = pneg %p99
        %p227 = pneg %p96
        %p228 = pneg %p127
        %p229 = pneg %p124
        %s230 = sand.u32 %s114, 1
        %s231 = scalar_lea.sflag [#allocation5], %s230
        %s232 = sand.u32 %s114, 1
        %s233 = smul.addr %s232, 64
        %s234 = scalar_lea.vmem [#allocation10], %s233
        %s235 = smul.u32 4, %s27
        %s236 = smul.u32 4, %s27
        %s237 = smul.u32 %s27, 4
        %s238 = smul.u32 %s27, 36
        %s239 = sld [smem:[#allocation8 + %s237]]
        %v240 = vstv %s239
        %vm241 = vcmask 130048
        %242 = vst.msk [vmem:[#allocation2] sm:$0xff] %vm241, %v240
        %243 = vst.msk [vmem:[#allocation2 + $0x8] sm:$0xff] %vm241, %v240
        %s244 = sld [smem:[#allocation7 + %s238]]
        %v245 = vld [vmem:[%s203] sm:$0xff]
        %v246 = vld [vmem:[%s203 + $0x8] sm:$0x7f]
        %v247 = vld [vmem:[#allocation2 + $0x1] sm:$0xff]
        %v248 = vld [vmem:[#allocation2 + $0x9] sm:$0x7f]
        %v249 = vstv %s244
        %v250 = vmul.f32 %v245, %v249
        %v251 = vmul.f32 %v246, %v249
        %254 = vrot.lane.b32.xlu0 %v250, 1
        %v255 = vpop.permute.xlu0 %254
        %256 = vrot.lane.b32.xlu0 %v251, 1
        %v257 = vpop.permute.xlu0 %256
        %v260 = vadd.f32 %v247, %v255
        %v261 = vadd.f32 %v248, %v257
        %vm262 = vcmask 130056
        %263 = vst.msk [vmem:[#allocation2 + $0x1] sm:$0xff] %vm262, %v260
        %vm264 = vcmask 129032
        %265 = vst.msk [vmem:[#allocation2 + $0x9] sm:$0x7f] %vm264, %v261
        %s266 = sadd.s32 %s238, 1
        %s267 = sld [smem:[#allocation7 + %s266]]
        %v268 = vld [vmem:[%s203] sm:$0xff]
        %v269 = vld [vmem:[%s203 + $0x8] sm:$0x7f]
        %v270 = vld [vmem:[#allocation2 + $0x1] sm:$0xff]
        %v271 = vld [vmem:[#allocation2 + $0x9] sm:$0x7f]
        %v272 = vstv %s267
        %v273 = vmul.f32 %v268, %v272
        %v274 = vmul.f32 %v269, %v272
        %v275 = vadd.f32 %v270, %v273
        %v276 = vadd.f32 %v271, %v274
        %277 = vst.msk [vmem:[#allocation2 + $0x1] sm:$0xff] %vm241, %v275
        %vm278 = vcmask 129024
        %279 = vst.msk [vmem:[#allocation2 + $0x9] sm:$0x7f] %vm278, %v276
        %s280 = sadd.s32 %s238, 2
        %s281 = sld [smem:[#allocation7 + %s280]]
        %v282 = vld [vmem:[%s203] sm:$0xff]
        %v283 = vld [vmem:[%s203 + $0x8] sm:$0x7f]
        %v284 = vld [vmem:[#allocation2 + $0x1] sm:$0xff]
        %v285 = vld [vmem:[#allocation2 + $0x9] sm:$0x7f]
        %v286 = vstv %s281
        %v287 = vmul.f32 %v282, %v286
        %v288 = vmul.f32 %v283, %v286
        %291 = vrot.lane.b32.xlu0 %v287, 127
        %v292 = vpop.permute.xlu0 %291
        %293 = vrot.lane.b32.xlu0 %v288, 127
        %v294 = vpop.permute.xlu0 %293
        %v297 = vadd.f32 %v284, %v292
        %v298 = vadd.f32 %v285, %v294
        %vm299 = vcmask 121856
        %300 = vst.msk [vmem:[#allocation2 + $0x1] sm:$0xff] %vm299, %v297
        %vm301 = vcmask 120832
        %302 = vst.msk [vmem:[#allocation2 + $0x9] sm:$0x7f] %vm301, %v298
        %s303 = sadd.s32 %s238, 3
        %s304 = sld [smem:[#allocation7 + %s303]]
        %v305 = vld [vmem:[%s203] sm:$0xff]
        %v306 = vld [vmem:[%s203 + $0x8] sm:$0xff]
        %v307 = vld [vmem:[#allocation2] sm:$0xff]
        %v308 = vld [vmem:[#allocation2 + $0x8] sm:$0xff]
        %v309 = vstv %s304
        %v310 = vmul.f32 %v305, %v309
        %v311 = vmul.f32 %v306, %v309
        %314 = vrot.lane.b32.xlu0 %v310, 1
        %v315 = vpop.permute.xlu0 %314
        %316 = vrot.lane.b32.xlu0 %v311, 1
        %v317 = vpop.permute.xlu0 %316
        %v320 = vadd.f32 %v307, %v315
        %v321 = vadd.f32 %v308, %v317
        %322 = vst.msk [vmem:[#allocation2] sm:$0xff] %vm262, %v320
        %323 = vst.msk [vmem:[#allocation2 + $0x8] sm:$0xff] %vm262, %v321
        %s324 = sadd.s32 %s238, 4
        %s325 = sld [smem:[#allocation7 + %s324]]
        %v326 = vld [vmem:[%s203] sm:$0xff]
        %v327 = vld [vmem:[%s203 + $0x8] sm:$0xff]
        %v328 = vld [vmem:[#allocation2] sm:$0xff]
        %v329 = vld [vmem:[#allocation2 + $0x8] sm:$0xff]
        %v330 = vstv %s325
        %v331 = vmul.f32 %v326, %v330
        %v332 = vmul.f32 %v327, %v330
        %v333 = vadd.f32 %v328, %v331
        %v334 = vadd.f32 %v329, %v332
        %335 = vst.msk [vmem:[#allocation2] sm:$0xff] %vm241, %v333
        %336 = vst.msk [vmem:[#allocation2 + $0x8] sm:$0xff] %vm241, %v334
        %s337 = sadd.s32 %s238, 5
        %s338 = sld [smem:[#allocation7 + %s337]]
        %v339 = vld [vmem:[%s203] sm:$0xff]
        %v340 = vld [vmem:[%s203 + $0x8] sm:$0xff]
        %v341 = vld [vmem:[#allocation2] sm:$0xff]
        %v342 = vld [vmem:[#allocation2 + $0x8] sm:$0xff]
        %v343 = vstv %s338
        %v344 = vmul.f32 %v339, %v343
        %v345 = vmul.f32 %v340, %v343
        %348 = vrot.lane.b32.xlu0 %v344, 127
        %v349 = vpop.permute.xlu0 %348
        %350 = vrot.lane.b32.xlu0 %v345, 127
        %v351 = vpop.permute.xlu0 %350
        %v354 = vadd.f32 %v341, %v349
        %v355 = vadd.f32 %v342, %v351
        %356 = vst.msk [vmem:[#allocation2] sm:$0xff] %vm299, %v354
        %357 = vst.msk [vmem:[#allocation2 + $0x8] sm:$0xff] %vm299, %v355
        %s358 = sadd.s32 %s238, 6
        %s359 = sld [smem:[#allocation7 + %s358]]
        %v360 = vld [vmem:[%s203 + $0x1] sm:$0xff]
        %v361 = vld [vmem:[%s203 + $0x9] sm:$0x7f]
        %v362 = vld [vmem:[#allocation2] sm:$0xff]
        %v363 = vld [vmem:[#allocation2 + $0x8] sm:$0x7f]
        %v364 = vstv %s359
        %v365 = vmul.f32 %v360, %v364
        %v366 = vmul.f32 %v361, %v364
        %369 = vrot.lane.b32.xlu0 %v365, 1
        %v370 = vpop.permute.xlu0 %369
        %371 = vrot.lane.b32.xlu0 %v366, 1
        %v372 = vpop.permute.xlu0 %371
        %v375 = vadd.f32 %v362, %v370
        %v376 = vadd.f32 %v363, %v372
        %377 = vst.msk [vmem:[#allocation2] sm:$0xff] %vm262, %v375
        %378 = vst.msk [vmem:[#allocation2 + $0x8] sm:$0x7f] %vm264, %v376
        %s379 = sadd.s32 %s238, 7
        %s380 = sld [smem:[#allocation7 + %s379]]
        %v381 = vld [vmem:[%s203 + $0x1] sm:$0xff]
        %v382 = vld [vmem:[%s203 + $0x9] sm:$0x7f]
        %v383 = vld [vmem:[#allocation2] sm:$0xff]
        %v384 = vld [vmem:[#allocation2 + $0x8] sm:$0x7f]
        %v385 = vstv %s380
        %v386 = vmul.f32 %v381, %v385
        %v387 = vmul.f32 %v382, %v385
        %v388 = vadd.f32 %v383, %v386
        %v389 = vadd.f32 %v384, %v387
        %390 = vst.msk [vmem:[#allocation2] sm:$0xff] %vm241, %v388
        %391 = vst.msk [vmem:[#allocation2 + $0x8] sm:$0x7f] %vm278, %v389
        %s392 = sadd.s32 %s238, 8
        %s393 = sld [smem:[#allocation7 + %s392]]
        %v394 = vld [vmem:[%s203 + $0x1] sm:$0xff]
        %v395 = vld [vmem:[%s203 + $0x9] sm:$0x7f]
        %v396 = vld [vmem:[#allocation2] sm:$0xff]
        %v397 = vld [vmem:[#allocation2 + $0x8] sm:$0x7f]
        %v398 = vstv %s393
        %v399 = vmul.f32 %v394, %v398
        %v400 = vmul.f32 %v395, %v398
        %403 = vrot.lane.b32.xlu0 %v399, 127
        %v404 = vpop.permute.xlu0 %403
        %405 = vrot.lane.b32.xlu0 %v400, 127
        %v406 = vpop.permute.xlu0 %405
        %v409 = vadd.f32 %v396, %v404
        %v410 = vadd.f32 %v397, %v406
        %411 = vst.msk [vmem:[#allocation2] sm:$0xff] %vm299, %v409
        %412 = vst.msk [vmem:[#allocation2 + $0x8] sm:$0x7f] %vm301, %v410
        %s413 = sadd.s32 %s237, 1
        %s414 = smul.u32 %s413, 9
        %s415 = sld [smem:[#allocation8 + %s413]]
        %v416 = vstv %s415
        %s417 = scalar_lea.vmem [#allocation2], 16
        %418 = vst.msk [vmem:[%s417] sm:$0xff] %vm241, %v416
        %419 = vst.msk [vmem:[%s417 + $0x8] sm:$0xff] %vm241, %v416
        %s420 = sld [smem:[#allocation7 + %s414]]
        %s421 = scalar_lea.vmem %s203, 16 [#allocation3]
        %v422 = vld [vmem:[%s421] sm:$0xff]
        %v423 = vld [vmem:[%s421 + $0x8] sm:$0x7f]
        %v424 = vld [vmem:[%s417 + $0x1] sm:$0xff]
        %v425 = vld [vmem:[%s417 + $0x9] sm:$0x7f]
        %v426 = vstv %s420
        %v427 = vmul.f32 %v422, %v426
        %v428 = vmul.f32 %v423, %v426
        %431 = vrot.lane.b32.xlu0 %v427, 1
        %v432 = vpop.permute.xlu0 %431
        %433 = vrot.lane.b32.xlu0 %v428, 1
        %v434 = vpop.permute.xlu0 %433
        %v437 = vadd.f32 %v424, %v432
        %v438 = vadd.f32 %v425, %v434
        %439 = vst.msk [vmem:[%s417 + $0x1] sm:$0xff] %vm262, %v437
        %440 = vst.msk [vmem:[%s417 + $0x9] sm:$0x7f] %vm264, %v438
        %s441 = sadd.s32 %s414, 1
        %s442 = sld [smem:[#allocation7 + %s441]]
        %v443 = vld [vmem:[%s421] sm:$0xff]
        %v444 = vld [vmem:[%s421 + $0x8] sm:$0x7f]
        %v445 = vld [vmem:[%s417 + $0x1] sm:$0xff]
        %v446 = vld [vmem:[%s417 + $0x9] sm:$0x7f]
        %v447 = vstv %s442
        %v448 = vmul.f32 %v443, %v447
        %v449 = vmul.f32 %v444, %v447
        %v450 = vadd.f32 %v445, %v448
        %v451 = vadd.f32 %v446, %v449
        %452 = vst.msk [vmem:[%s417 + $0x1] sm:$0xff] %vm241, %v450
        %453 = vst.msk [vmem:[%s417 + $0x9] sm:$0x7f] %vm278, %v451
        %s454 = sadd.s32 %s414, 2
        %s455 = sld [smem:[#allocation7 + %s454]]
        %v456 = vld [vmem:[%s421] sm:$0xff]
        %v457 = vld [vmem:[%s421 + $0x8] sm:$0x7f]
        %v458 = vld [vmem:[%s417 + $0x1] sm:$0xff]
        %v459 = vld [vmem:[%s417 + $0x9] sm:$0x7f]
        %v460 = vstv %s455
        %v461 = vmul.f32 %v456, %v460
        %v462 = vmul.f32 %v457, %v460
        %465 = vrot.lane.b32.xlu0 %v461, 127
        %v466 = vpop.permute.xlu0 %465
        %467 = vrot.lane.b32.xlu0 %v462, 127
        %v468 = vpop.permute.xlu0 %467
        %v471 = vadd.f32 %v458, %v466
        %v472 = vadd.f32 %v459, %v468
        %473 = vst.msk [vmem:[%s417 + $0x1] sm:$0xff] %vm299, %v471
        %474 = vst.msk [vmem:[%s417 + $0x9] sm:$0x7f] %vm301, %v472
        %s475 = sadd.s32 %s414, 3
        %s476 = sld [smem:[#allocation7 + %s475]]
        %v477 = vld [vmem:[%s421] sm:$0xff]
        %v478 = vld [vmem:[%s421 + $0x8] sm:$0xff]
        %v479 = vld [vmem:[%s417] sm:$0xff]
        %v480 = vld [vmem:[%s417 + $0x8] sm:$0xff]
        %v481 = vstv %s476
        %v482 = vmul.f32 %v477, %v481
        %v483 = vmul.f32 %v478, %v481
        %486 = vrot.lane.b32.xlu0 %v482, 1
        %v487 = vpop.permute.xlu0 %486
        %488 = vrot.lane.b32.xlu0 %v483, 1
        %v489 = vpop.permute.xlu0 %488
        %v492 = vadd.f32 %v479, %v487
        %v493 = vadd.f32 %v480, %v489
        %494 = vst.msk [vmem:[%s417] sm:$0xff] %vm262, %v492
        %495 = vst.msk [vmem:[%s417 + $0x8] sm:$0xff] %vm262, %v493
        %s496 = sadd.s32 %s414, 4
        %s497 = sld [smem:[#allocation7 + %s496]]
        %v498 = vld [vmem:[%s421] sm:$0xff]
        %v499 = vld [vmem:[%s421 + $0x8] sm:$0xff]
        %v500 = vld [vmem:[%s417] sm:$0xff]
        %v501 = vld [vmem:[%s417 + $0x8] sm:$0xff]
        %v502 = vstv %s497
        %v503 = vmul.f32 %v498, %v502
        %v504 = vmul.f32 %v499, %v502
        %v505 = vadd.f32 %v500, %v503
        %v506 = vadd.f32 %v501, %v504
        %507 = vst.msk [vmem:[%s417] sm:$0xff] %vm241, %v505
        %508 = vst.msk [vmem:[%s417 + $0x8] sm:$0xff] %vm241, %v506
        %s509 = sadd.s32 %s414, 5
        %s510 = sld [smem:[#allocation7 + %s509]]
        %v511 = vld [vmem:[%s421] sm:$0xff]
        %v512 = vld [vmem:[%s421 + $0x8] sm:$0xff]
        %v513 = vld [vmem:[%s417] sm:$0xff]
        %v514 = vld [vmem:[%s417 + $0x8] sm:$0xff]
        %v515 = vstv %s510
        %v516 = vmul.f32 %v511, %v515
        %v517 = vmul.f32 %v512, %v515
        %520 = vrot.lane.b32.xlu0 %v516, 127
        %v521 = vpop.permute.xlu0 %520
        %522 = vrot.lane.b32.xlu0 %v517, 127
        %v523 = vpop.permute.xlu0 %522
        %v526 = vadd.f32 %v513, %v521
        %v527 = vadd.f32 %v514, %v523
        %528 = vst.msk [vmem:[%s417] sm:$0xff] %vm299, %v526
        %529 = vst.msk [vmem:[%s417 + $0x8] sm:$0xff] %vm299, %v527
        %s530 = sadd.s32 %s414, 6
        %s531 = sld [smem:[#allocation7 + %s530]]
        %v532 = vld [vmem:[%s421 + $0x1] sm:$0xff]
        %v533 = vld [vmem:[%s421 + $0x9] sm:$0x7f]
        %v534 = vld [vmem:[%s417] sm:$0xff]
        %v535 = vld [vmem:[%s417 + $0x8] sm:$0x7f]
        %v536 = vstv %s531
        %v537 = vmul.f32 %v532, %v536
        %v538 = vmul.f32 %v533, %v536
        %541 = vrot.lane.b32.xlu0 %v537, 1
        %v542 = vpop.permute.xlu0 %541
        %543 = vrot.lane.b32.xlu0 %v538, 1
        %v544 = vpop.permute.xlu0 %543
        %v547 = vadd.f32 %v534, %v542
        %v548 = vadd.f32 %v535, %v544
        %549 = vst.msk [vmem:[%s417] sm:$0xff] %vm262, %v547
        %550 = vst.msk [vmem:[%s417 + $0x8] sm:$0x7f] %vm264, %v548
        %s551 = sadd.s32 %s414, 7
        %s552 = sld [smem:[#allocation7 + %s551]]
        %v553 = vld [vmem:[%s421 + $0x1] sm:$0xff]
        %v554 = vld [vmem:[%s421 + $0x9] sm:$0x7f]
        %v555 = vld [vmem:[%s417] sm:$0xff]
        %v556 = vld [vmem:[%s417 + $0x8] sm:$0x7f]
        %v557 = vstv %s552
        %v558 = vmul.f32 %v553, %v557
        %v559 = vmul.f32 %v554, %v557
        %v560 = vadd.f32 %v555, %v558
        %v561 = vadd.f32 %v556, %v559
        %562 = vst.msk [vmem:[%s417] sm:$0xff] %vm241, %v560
        %563 = vst.msk [vmem:[%s417 + $0x8] sm:$0x7f] %vm278, %v561
        %s564 = sadd.s32 %s414, 8
        %s565 = sld [smem:[#allocation7 + %s564]]
        %v566 = vld [vmem:[%s421 + $0x1] sm:$0xff]
        %v567 = vld [vmem:[%s421 + $0x9] sm:$0x7f]
        %v568 = vld [vmem:[%s417] sm:$0xff]
        %v569 = vld [vmem:[%s417 + $0x8] sm:$0x7f]
        %v570 = vstv %s565
        %v571 = vmul.f32 %v566, %v570
        %v572 = vmul.f32 %v567, %v570
        %575 = vrot.lane.b32.xlu0 %v571, 127
        %v576 = vpop.permute.xlu0 %575
        %577 = vrot.lane.b32.xlu0 %v572, 127
        %v578 = vpop.permute.xlu0 %577
        %v581 = vadd.f32 %v568, %v576
        %v582 = vadd.f32 %v569, %v578
        %583 = vst.msk [vmem:[%s417] sm:$0xff] %vm299, %v581
        %584 = vst.msk [vmem:[%s417 + $0x8] sm:$0x7f] %vm301, %v582
        %s585 = sadd.s32 %s237, 2
        %s586 = smul.u32 %s585, 9
        %s587 = sld [smem:[#allocation8 + %s585]]
        %v588 = vstv %s587
        %s589 = scalar_lea.vmem [#allocation2], 32
        %590 = vst.msk [vmem:[%s589] sm:$0xff] %vm241, %v588
        %591 = vst.msk [vmem:[%s589 + $0x8] sm:$0xff] %vm241, %v588
        %s592 = sld [smem:[#allocation7 + %s586]]
        %s593 = scalar_lea.vmem %s203, 32 [#allocation3]
        %v594 = vld [vmem:[%s593] sm:$0xff]
        %v595 = vld [vmem:[%s593 + $0x8] sm:$0x7f]
        %v596 = vld [vmem:[%s589 + $0x1] sm:$0xff]
        %v597 = vld [vmem:[%s589 + $0x9] sm:$0x7f]
        %v598 = vstv %s592
        %v599 = vmul.f32 %v594, %v598
        %v600 = vmul.f32 %v595, %v598
        %603 = vrot.lane.b32.xlu0 %v599, 1
        %v604 = vpop.permute.xlu0 %603
        %605 = vrot.lane.b32.xlu0 %v600, 1
        %v606 = vpop.permute.xlu0 %605
        %v609 = vadd.f32 %v596, %v604
        %v610 = vadd.f32 %v597, %v606
        %611 = vst.msk [vmem:[%s589 + $0x1] sm:$0xff] %vm262, %v609
        %612 = vst.msk [vmem:[%s589 + $0x9] sm:$0x7f] %vm264, %v610
        %s613 = sadd.s32 %s586, 1
        %s614 = sld [smem:[#allocation7 + %s613]]
        %v615 = vld [vmem:[%s593] sm:$0xff]
        %v616 = vld [vmem:[%s593 + $0x8] sm:$0x7f]
        %v617 = vld [vmem:[%s589 + $0x1] sm:$0xff]
        %v618 = vld [vmem:[%s589 + $0x9] sm:$0x7f]
        %v619 = vstv %s614
        %v620 = vmul.f32 %v615, %v619
        %v621 = vmul.f32 %v616, %v619
        %v622 = vadd.f32 %v617, %v620
        %v623 = vadd.f32 %v618, %v621
        %624 = vst.msk [vmem:[%s589 + $0x1] sm:$0xff] %vm241, %v622
        %625 = vst.msk [vmem:[%s589 + $0x9] sm:$0x7f] %vm278, %v623
        %s626 = sadd.s32 %s586, 2
        %s627 = sld [smem:[#allocation7 + %s626]]
        %v628 = vld [vmem:[%s593] sm:$0xff]
        %v629 = vld [vmem:[%s593 + $0x8] sm:$0x7f]
        %v630 = vld [vmem:[%s589 + $0x1] sm:$0xff]
        %v631 = vld [vmem:[%s589 + $0x9] sm:$0x7f]
        %v632 = vstv %s627
        %v633 = vmul.f32 %v628, %v632
        %v634 = vmul.f32 %v629, %v632
        %637 = vrot.lane.b32.xlu0 %v633, 127
        %v638 = vpop.permute.xlu0 %637
        %639 = vrot.lane.b32.xlu0 %v634, 127
        %v640 = vpop.permute.xlu0 %639
        %v643 = vadd.f32 %v630, %v638
        %v644 = vadd.f32 %v631, %v640
        %645 = vst.msk [vmem:[%s589 + $0x1] sm:$0xff] %vm299, %v643
        %646 = vst.msk [vmem:[%s589 + $0x9] sm:$0x7f] %vm301, %v644
        %s647 = sadd.s32 %s586, 3
        %s648 = sld [smem:[#allocation7 + %s647]]
        %v649 = vld [vmem:[%s593] sm:$0xff]
        %v650 = vld [vmem:[%s593 + $0x8] sm:$0xff]
        %v651 = vld [vmem:[%s589] sm:$0xff]
        %v652 = vld [vmem:[%s589 + $0x8] sm:$0xff]
        %v653 = vstv %s648
        %v654 = vmul.f32 %v649, %v653
        %v655 = vmul.f32 %v650, %v653
        %658 = vrot.lane.b32.xlu0 %v654, 1
        %v659 = vpop.permute.xlu0 %658
        %660 = vrot.lane.b32.xlu0 %v655, 1
        %v661 = vpop.permute.xlu0 %660
        %v664 = vadd.f32 %v651, %v659
        %v665 = vadd.f32 %v652, %v661
        %666 = vst.msk [vmem:[%s589] sm:$0xff] %vm262, %v664
        %667 = vst.msk [vmem:[%s589 + $0x8] sm:$0xff] %vm262, %v665
        %s668 = sadd.s32 %s586, 4
        %s669 = sld [smem:[#allocation7 + %s668]]
        %v670 = vld [vmem:[%s593] sm:$0xff]
        %v671 = vld [vmem:[%s593 + $0x8] sm:$0xff]
        %v672 = vld [vmem:[%s589] sm:$0xff]
        %v673 = vld [vmem:[%s589 + $0x8] sm:$0xff]
        %v674 = vstv %s669
        %v675 = vmul.f32 %v670, %v674
        %v676 = vmul.f32 %v671, %v674
        %v677 = vadd.f32 %v672, %v675
        %v678 = vadd.f32 %v673, %v676
        %679 = vst.msk [vmem:[%s589] sm:$0xff] %vm241, %v677
        %680 = vst.msk [vmem:[%s589 + $0x8] sm:$0xff] %vm241, %v678
        %s681 = sadd.s32 %s586, 5
        %s682 = sld [smem:[#allocation7 + %s681]]
        %v683 = vld [vmem:[%s593] sm:$0xff]
        %v684 = vld [vmem:[%s593 + $0x8] sm:$0xff]
        %v685 = vld [vmem:[%s589] sm:$0xff]
        %v686 = vld [vmem:[%s589 + $0x8] sm:$0xff]
        %v687 = vstv %s682
        %v688 = vmul.f32 %v683, %v687
        %v689 = vmul.f32 %v684, %v687
        %692 = vrot.lane.b32.xlu0 %v688, 127
        %v693 = vpop.permute.xlu0 %692
        %694 = vrot.lane.b32.xlu0 %v689, 127
        %v695 = vpop.permute.xlu0 %694
        %v698 = vadd.f32 %v685, %v693
        %v699 = vadd.f32 %v686, %v695
        %700 = vst.msk [vmem:[%s589] sm:$0xff] %vm299, %v698
        %701 = vst.msk [vmem:[%s589 + $0x8] sm:$0xff] %vm299, %v699
        %s702 = sadd.s32 %s586, 6
        %s703 = sld [smem:[#allocation7 + %s702]]
        %v704 = vld [vmem:[%s593 + $0x1] sm:$0xff]
        %v705 = vld [vmem:[%s593 + $0x9] sm:$0x7f]
        %v706 = vld [vmem:[%s589] sm:$0xff]
        %v707 = vld [vmem:[%s589 + $0x8] sm:$0x7f]
        %v708 = vstv %s703
        %v709 = vmul.f32 %v704, %v708
        %v710 = vmul.f32 %v705, %v708
        %713 = vrot.lane.b32.xlu0 %v709, 1
        %v714 = vpop.permute.xlu0 %713
        %715 = vrot.lane.b32.xlu0 %v710, 1
        %v716 = vpop.permute.xlu0 %715
        %v719 = vadd.f32 %v706, %v714
        %v720 = vadd.f32 %v707, %v716
        %721 = vst.msk [vmem:[%s589] sm:$0xff] %vm262, %v719
        %722 = vst.msk [vmem:[%s589 + $0x8] sm:$0x7f] %vm264, %v720
        %s723 = sadd.s32 %s586, 7
        %s724 = sld [smem:[#allocation7 + %s723]]
        %v725 = vld [vmem:[%s593 + $0x1] sm:$0xff]
        %v726 = vld [vmem:[%s593 + $0x9] sm:$0x7f]
        %v727 = vld [vmem:[%s589] sm:$0xff]
        %v728 = vld [vmem:[%s589 + $0x8] sm:$0x7f]
        %v729 = vstv %s724
        %v730 = vmul.f32 %v725, %v729
        %v731 = vmul.f32 %v726, %v729
        %v732 = vadd.f32 %v727, %v730
        %v733 = vadd.f32 %v728, %v731
        %734 = vst.msk [vmem:[%s589] sm:$0xff] %vm241, %v732
        %735 = vst.msk [vmem:[%s589 + $0x8] sm:$0x7f] %vm278, %v733
        %s736 = sadd.s32 %s586, 8
        %s737 = sld [smem:[#allocation7 + %s736]]
        %v738 = vld [vmem:[%s593 + $0x1] sm:$0xff]
        %v739 = vld [vmem:[%s593 + $0x9] sm:$0x7f]
        %v740 = vld [vmem:[%s589] sm:$0xff]
        %v741 = vld [vmem:[%s589 + $0x8] sm:$0x7f]
        %v742 = vstv %s737
        %v743 = vmul.f32 %v738, %v742
        %v744 = vmul.f32 %v739, %v742
        %747 = vrot.lane.b32.xlu0 %v743, 127
        %v748 = vpop.permute.xlu0 %747
        %749 = vrot.lane.b32.xlu0 %v744, 127
        %v750 = vpop.permute.xlu0 %749
        %v753 = vadd.f32 %v740, %v748
        %v754 = vadd.f32 %v741, %v750
        %755 = vst.msk [vmem:[%s589] sm:$0xff] %vm299, %v753
        %756 = vst.msk [vmem:[%s589 + $0x8] sm:$0x7f] %vm301, %v754
        %s757 = sadd.s32 %s237, 3
        %s758 = smul.u32 %s757, 9
        %s759 = sld [smem:[#allocation8 + %s757]]
        %v760 = vstv %s759
        %s761 = scalar_lea.vmem [#allocation2], 48
        %762 = vst.msk [vmem:[%s761] sm:$0xff] %vm241, %v760
        %763 = vst.msk [vmem:[%s761 + $0x8] sm:$0xff] %vm241, %v760
        %s764 = sld [smem:[#allocation7 + %s758]]
        %s765 = scalar_lea.vmem %s203, 48 [#allocation3]
        %v766 = vld [vmem:[%s765] sm:$0xff]
        %v767 = vld [vmem:[%s765 + $0x8] sm:$0x7f]
        %v768 = vld [vmem:[%s761 + $0x1] sm:$0xff]
        %v769 = vld [vmem:[%s761 + $0x9] sm:$0x7f]
        %v770 = vstv %s764
        %v771 = vmul.f32 %v766, %v770
        %v772 = vmul.f32 %v767, %v770
        %775 = vrot.lane.b32.xlu0 %v771, 1
        %v776 = vpop.permute.xlu0 %775
        %777 = vrot.lane.b32.xlu0 %v772, 1
        %v778 = vpop.permute.xlu0 %777
        %v781 = vadd.f32 %v768, %v776
        %v782 = vadd.f32 %v769, %v778
        %783 = vst.msk [vmem:[%s761 + $0x1] sm:$0xff] %vm262, %v781
        %784 = vst.msk [vmem:[%s761 + $0x9] sm:$0x7f] %vm264, %v782
        %s785 = sadd.s32 %s758, 1
        %s786 = sld [smem:[#allocation7 + %s785]]
        %v787 = vld [vmem:[%s765] sm:$0xff]
        %v788 = vld [vmem:[%s765 + $0x8] sm:$0x7f]
        %v789 = vld [vmem:[%s761 + $0x1] sm:$0xff]
        %v790 = vld [vmem:[%s761 + $0x9] sm:$0x7f]
        %v791 = vstv %s786
        %v792 = vmul.f32 %v787, %v791
        %v793 = vmul.f32 %v788, %v791
        %v794 = vadd.f32 %v789, %v792
        %v795 = vadd.f32 %v790, %v793
        %796 = vst.msk [vmem:[%s761 + $0x1] sm:$0xff] %vm241, %v794
        %797 = vst.msk [vmem:[%s761 + $0x9] sm:$0x7f] %vm278, %v795
        %s798 = sadd.s32 %s758, 2
        %s799 = sld [smem:[#allocation7 + %s798]]
        %v800 = vld [vmem:[%s765] sm:$0xff]
        %v801 = vld [vmem:[%s765 + $0x8] sm:$0x7f]
        %v802 = vld [vmem:[%s761 + $0x1] sm:$0xff]
        %v803 = vld [vmem:[%s761 + $0x9] sm:$0x7f]
        %v804 = vstv %s799
        %v805 = vmul.f32 %v800, %v804
        %v806 = vmul.f32 %v801, %v804
        %809 = vrot.lane.b32.xlu0 %v805, 127
        %v810 = vpop.permute.xlu0 %809
        %811 = vrot.lane.b32.xlu0 %v806, 127
        %v812 = vpop.permute.xlu0 %811
        %v815 = vadd.f32 %v802, %v810
        %v816 = vadd.f32 %v803, %v812
        %817 = vst.msk [vmem:[%s761 + $0x1] sm:$0xff] %vm299, %v815
        %818 = vst.msk [vmem:[%s761 + $0x9] sm:$0x7f] %vm301, %v816
        %s819 = sadd.s32 %s758, 3
        %s820 = sld [smem:[#allocation7 + %s819]]
        %v821 = vld [vmem:[%s765] sm:$0xff]
        %v822 = vld [vmem:[%s765 + $0x8] sm:$0xff]
        %v823 = vld [vmem:[%s761] sm:$0xff]
        %v824 = vld [vmem:[%s761 + $0x8] sm:$0xff]
        %v825 = vstv %s820
        %v826 = vmul.f32 %v821, %v825
        %v827 = vmul.f32 %v822, %v825
        %830 = vrot.lane.b32.xlu0 %v826, 1
        %v831 = vpop.permute.xlu0 %830
        %832 = vrot.lane.b32.xlu0 %v827, 1
        %v833 = vpop.permute.xlu0 %832
        %v836 = vadd.f32 %v823, %v831
        %v837 = vadd.f32 %v824, %v833
        %838 = vst.msk [vmem:[%s761] sm:$0xff] %vm262, %v836
        %839 = vst.msk [vmem:[%s761 + $0x8] sm:$0xff] %vm262, %v837
        %s840 = sadd.s32 %s758, 4
        %s841 = sld [smem:[#allocation7 + %s840]]
        %v842 = vld [vmem:[%s765] sm:$0xff]
        %v843 = vld [vmem:[%s765 + $0x8] sm:$0xff]
        %v844 = vld [vmem:[%s761] sm:$0xff]
        %v845 = vld [vmem:[%s761 + $0x8] sm:$0xff]
        %v846 = vstv %s841
        %v847 = vmul.f32 %v842, %v846
        %v848 = vmul.f32 %v843, %v846
        %v849 = vadd.f32 %v844, %v847
        %v850 = vadd.f32 %v845, %v848
        %851 = vst.msk [vmem:[%s761] sm:$0xff] %vm241, %v849
        %852 = vst.msk [vmem:[%s761 + $0x8] sm:$0xff] %vm241, %v850
        %s853 = sadd.s32 %s758, 5
        %s854 = sld [smem:[#allocation7 + %s853]]
        %v855 = vld [vmem:[%s765] sm:$0xff]
        %v856 = vld [vmem:[%s765 + $0x8] sm:$0xff]
        %v857 = vld [vmem:[%s761] sm:$0xff]
        %v858 = vld [vmem:[%s761 + $0x8] sm:$0xff]
        %v859 = vstv %s854
        %v860 = vmul.f32 %v855, %v859
        %v861 = vmul.f32 %v856, %v859
        %864 = vrot.lane.b32.xlu0 %v860, 127
        %v865 = vpop.permute.xlu0 %864
        %866 = vrot.lane.b32.xlu0 %v861, 127
        %v867 = vpop.permute.xlu0 %866
        %v870 = vadd.f32 %v857, %v865
        %v871 = vadd.f32 %v858, %v867
        %872 = vst.msk [vmem:[%s761] sm:$0xff] %vm299, %v870
        %873 = vst.msk [vmem:[%s761 + $0x8] sm:$0xff] %vm299, %v871
        %s874 = sadd.s32 %s758, 6
        %s875 = sld [smem:[#allocation7 + %s874]]
        %v876 = vld [vmem:[%s765 + $0x1] sm:$0xff]
        %v877 = vld [vmem:[%s765 + $0x9] sm:$0x7f]
        %v878 = vld [vmem:[%s761] sm:$0xff]
        %v879 = vld [vmem:[%s761 + $0x8] sm:$0x7f]
        %v880 = vstv %s875
        %v881 = vmul.f32 %v876, %v880
        %v882 = vmul.f32 %v877, %v880
        %885 = vrot.lane.b32.xlu0 %v881, 1
        %v886 = vpop.permute.xlu0 %885
        %887 = vrot.lane.b32.xlu0 %v882, 1
        %v888 = vpop.permute.xlu0 %887
        %v891 = vadd.f32 %v878, %v886
        %v892 = vadd.f32 %v879, %v888
        %893 = vst.msk [vmem:[%s761] sm:$0xff] %vm262, %v891
        %894 = vst.msk [vmem:[%s761 + $0x8] sm:$0x7f] %vm264, %v892
        %s895 = sadd.s32 %s758, 7
        %s896 = sld [smem:[#allocation7 + %s895]]
        %v897 = vld [vmem:[%s765 + $0x1] sm:$0xff]
        %v898 = vld [vmem:[%s765 + $0x9] sm:$0x7f]
        %v899 = vld [vmem:[%s761] sm:$0xff]
        %v900 = vld [vmem:[%s761 + $0x8] sm:$0x7f]
        %v901 = vstv %s896
        %v902 = vmul.f32 %v897, %v901
        %v903 = vmul.f32 %v898, %v901
        %v904 = vadd.f32 %v899, %v902
        %v905 = vadd.f32 %v900, %v903
        %906 = vst.msk [vmem:[%s761] sm:$0xff] %vm241, %v904
        %907 = vst.msk [vmem:[%s761 + $0x8] sm:$0x7f] %vm278, %v905
        %s908 = sadd.s32 %s758, 8
        %s909 = sld [smem:[#allocation7 + %s908]]
        %v910 = vld [vmem:[%s765 + $0x1] sm:$0xff]
        %v911 = vld [vmem:[%s765 + $0x9] sm:$0x7f]
        %v912 = vld [vmem:[%s761] sm:$0xff]
        %v913 = vld [vmem:[%s761 + $0x8] sm:$0x7f]
        %v914 = vstv %s909
        %v915 = vmul.f32 %v910, %v914
        %v916 = vmul.f32 %v911, %v914
        %919 = vrot.lane.b32.xlu0 %v915, 127
        %v920 = vpop.permute.xlu0 %919
        %921 = vrot.lane.b32.xlu0 %v916, 127
        %v922 = vpop.permute.xlu0 %921
        %v925 = vadd.f32 %v912, %v920
        %v926 = vadd.f32 %v913, %v922
        %927 = vst.msk [vmem:[%s761] sm:$0xff] %vm299, %v925
        %928 = vst.msk [vmem:[%s761 + $0x8] sm:$0x7f] %vm301, %v926
        %v929 = vld [vmem:[#allocation2] sm:$0xff]
        %v930 = vld [vmem:[#allocation2 + $0x8] sm:$0xff]
        %v931 = vld [vmem:[#allocation2 + $0x10] sm:$0xff]
        %v932 = vld [vmem:[#allocation2 + $0x18] sm:$0xff]
        %v933 = vld [vmem:[#allocation2 + $0x20] sm:$0xff]
        %v934 = vld [vmem:[#allocation2 + $0x28] sm:$0xff]
        %v935 = vld [vmem:[#allocation2 + $0x30] sm:$0xff]
        %v936 = vld [vmem:[#allocation2 + $0x38] sm:$0xff]
        %937 = vst.msk [vmem:[%s234] sm:$0xff] %vm241, %v929
        %938 = vst.msk [vmem:[%s234 + $0x8] sm:$0xff] %vm241, %v930
        %939 = vst.msk [vmem:[%s234 + $0x10] sm:$0xff] %vm241, %v931
        %940 = vst.msk [vmem:[%s234 + $0x18] sm:$0xff] %vm241, %v932
        %941 = vst.msk [vmem:[%s234 + $0x20] sm:$0xff] %vm241, %v933
        %942 = vst.msk [vmem:[%s234 + $0x28] sm:$0xff] %vm241, %v934
        %943 = vst.msk [vmem:[%s234 + $0x30] sm:$0xff] %vm241, %v935
        %944 = vst.msk [vmem:[%s234 + $0x38] sm:$0xff] %vm241, %v936
        %s945 = sand.u32 %s114, 1
        %s946 = scalar_lea.sflag [#allocation5], %s945
        %s947 = sand.u32 %s114, 1
        %s948 = smul.addr %s947, 64
        %s949 = scalar_lea.vmem [#allocation10], %s948
        // Predicated region
        $region45: #{tpu_custom_call.1} parent=31 // pred_check
          %p950 = pneg %p124
        $region46: #{tpu_custom_call.1} parent=31 // pred_check_branch
          %952 = sbr.rel (%p950) target = $region48
        $region47: #{tpu_custom_call.1} parent=31 // pred_region
          %s953 = smul.u32 4, %s27
          %s955 = ssub.s32 1024, 1024
          %956 = vsyncadd %s946, %s955
          %s957 = smul.addr %s953, 2
          %s958 = smul.addr %s26, 8
          %s959 = sadd.s32 %s957, %s958
          %s960 = smul.addr %s959, 128
          %s961 = scalar_lea.hbm %s3, %s960
          %s962 = sshll.u32 %s949, 4
          %s963 = int_to_ptr.vmem [resolvable:$true] %s962
          %968 = dma.vmem_to_hbm [thread:$0]  %s963, 1024, %s961, %s946, 128, 128, 8
        $region48: #{tpu_custom_call.1} parent=31 // pred_fallthru
          _
      $region32: #{tpu_custom_call.1} parent=5 // pred_fallthru
        _
      %p969 = scmp.le.s32.totalorder 2, %s17
      // Predicated region
      $region49: #{tpu_custom_call.1} parent=5 // pred_check
        %p970 = pneg %p969
      $region50: #{tpu_custom_call.1} parent=5 // pred_check_branch
        %972 = sbr.rel (%p970) target = $region52
      $region51: #{tpu_custom_call.1} parent=5 // pred_region
        %s973 = ssub.s32 %s17, 2
        // Predicated region
        $region53: #{tpu_custom_call.1} parent=51 // pred_check
          %p974 = pneg %p130
        $region54: #{tpu_custom_call.1} parent=51 // pred_check_branch
          %976 = sbr.rel (%p974) target = $region56
        $region55: #{tpu_custom_call.1} parent=51 // pred_region
          %s977 = sand.u32 %s115, 1
          %s978 = scalar_lea.sflag [#allocation5], %s977
          %s979 = sand.u32 %s115, 1
          %s980 = smul.addr %s979, 64
          %s981 = scalar_lea.vmem [#allocation10], %s980
          %982 = dma.done %s978, 1024
        $region56: #{tpu_custom_call.1} parent=51 // pred_fallthru
          _
      $region52: #{tpu_custom_call.1} parent=5 // pred_fallthru
        _
    $region6: #{tpu_custom_call.1} parent=1 // loop_footer
      %s21 = sadd.s32 1, %s17
    $region7: #{tpu_custom_call.1} parent=1 // loop_footer_branch
      %16 = sbr.rel target = $region3
    $region8: #{tpu_custom_call.1} parent=1 // loop_exit
      _
    %983 = vsyncpa [#allocation4], 1
    %s984 = scalar_lea.sflag [#allocation4], 1
    %985 = vsyncpa %s984, 1
    %986 = vsyncpa [#allocation5], 1
    %s987 = scalar_lea.sflag [#allocation5], 1
    %988 = vsyncpa %s987, 1
    %989 = vsyncpa [#allocation6], 1
    %s990 = scalar_lea.sflag [#allocation6], 1
    %991 = vsyncpa %s990, 1
    %992 = vsyncpa [#allocation9], 1

</llo_original>
